<compile_context>
chip_gen: v6e
topology: v6e:2x2x1
jax: 0.10.0
libtpu: 0.0.40
codegen_flags: <defaults>
</compile_context>

<pallas_src>
import jax
import jax.numpy as jnp
from jax.experimental import pallas as pl
from jax.experimental.pallas import tpu as pltpu

D_IN = 256
D_HID = 256 * 4          # 1024
D_OUT = 10
D_OUT_PAD = 128          # lane-pad layer_2's weight/bias so its matmul is lane-dense
TM_TARGET = 1024         # max batch tile (sweepable); fills the MXU and amortizes
                         # the ~0.35us per-grid-step cost on v6e/v7x


def mlp_kernel(x_ref, w1_ref, b1_ref, w2_ref, b2_ref, o_ref):
    # In-kernel f32 -> bf16 cast of the activation tile (no separate XLA cast pass).
    x = x_ref[...].astype(jnp.bfloat16)
    # layer_1: (TM, 256) bf16 @ (256, 1024) bf16 -> f32 accumulate on the MXU, + bias.
    h = jnp.dot(x, w1_ref[...], preferred_element_type=jnp.float32) + b1_ref[...]
    # ReLU, then back to bf16 for layer_2's native MXU input path.
    h = jnp.maximum(h, 0.0).astype(jnp.bfloat16)
    # layer_2: (TM, 1024) bf16 @ (1024, 128 zero-padded) bf16 -> f32 accumulate, + bias.
    o = jnp.dot(h, w2_ref[...], preferred_element_type=jnp.float32) + b2_ref[...]
    # Store only the 10 real output lanes (masked store): ~12.8x less HBM writeback
    # than a 128-lane-padded f32 output, and no wrapper-side slice afterwards.
    o_ref[...] = o[:, :D_OUT].astype(o_ref.dtype)


def prepare_params(w1, b1, w2, b2):
    """One-time parameter prep (NOT per forward): cast weights to bf16 and lane-pad
    layer_2's 10-wide output dim to 128 so the second matmul is lane-dense."""
    w1_p = w1.astype(jnp.bfloat16)                                   # (256, 1024)
    b1_p = b1.reshape(1, D_HID).astype(jnp.float32)                  # (1, 1024)
    w2_p = jnp.zeros((D_HID, D_OUT_PAD), jnp.bfloat16).at[:, :D_OUT].set(
        w2.astype(jnp.bfloat16))                                     # (1024, 128)
    b2_p = jnp.zeros((1, D_OUT_PAD), jnp.float32).at[:, :D_OUT].set(
        b2.astype(jnp.float32))                                      # (1, 128)
    return w1_p, b1_p, w2_p, b2_p


def _round_up(x, m):
    return (x + m - 1) // m * m


def _choose_tm(B):
    """Pick the batch tile.

    - B <= 256: a single sublane-aligned tile (rounded to 16 rows for bf16 packing):
      pure latency path, no pipelining needed.
    - B  > 256: tiles are multiples of 256 capped at TM_TARGET, chosen so the grid has
      >= 2 (usually >= 4) steps -> both v7x TensorCores get sharded work via the
      "parallel" batch axis, and per-step MXU work stays well above the fixed
      per-grid-step overhead on v6e/v7x.
    """
    if B <= 256:
        return _round_up(B, 16)
    quarter = -(-B // 4)                      # ceil(B / 4)
    return min(TM_TARGET, _round_up(quarter, 256))


def mynet_forward(x, w1_p, b1_p, w2_p, b2_p):
    """x: (B, 256) float32. Params from prepare_params(). Returns (B, 10) float32."""
    B = x.shape[0]
    tm = _choose_tm(B)
    b_pad = _round_up(B, tm)
    if b_pad != B:
        x = jnp.pad(x, ((0, b_pad - B), (0, 0)))

    grid = (b_pad // tm,)

    out = pl.pallas_call(
        mlp_kernel,
        out_shape=jax.ShapeDtypeStruct((b_pad, D_OUT), jnp.float32),
        grid_spec=pltpu.PrefetchScalarGridSpec(
            num_scalar_prefetch=0,
            grid=grid,
            in_specs=[
                pl.BlockSpec((tm, D_IN), lambda i: (i, 0)),           # x: tiled over batch (f32)
                pl.BlockSpec((D_IN, D_HID), lambda i: (0, 0)),        # w1: VMEM-resident
                pl.BlockSpec((1, D_HID), lambda i: (0, 0)),           # b1: VMEM-resident
                pl.BlockSpec((D_HID, D_OUT_PAD), lambda i: (0, 0)),   # w2 (pre-padded)
                pl.BlockSpec((1, D_OUT_PAD), lambda i: (0, 0)),       # b2 (pre-padded)
            ],
            # Last dim (10) equals the full array dim -> legal block; masked stores
            # trade a few vst.msk ops for 12.8x less output HBM traffic.
            out_specs=pl.BlockSpec((tm, D_OUT), lambda i: (i, 0)),
        ),
        compiler_params=pltpu.CompilerParams(
            # Batch tiles are independent -> shard grid steps across TensorCores (v7x).
            dimension_semantics=("parallel",),
            # Explicit limit so TM up to 1024 also compiles on v5e (16 MiB default
            # scoped limit there); actual worst-case use is ~11 MiB.
            vmem_limit_bytes=32 * 1024 * 1024,
        ),
    )(x, w1_p, b1_p, w2_p, b2_p)

    # Only batch padding (if any) remains to drop; lanes are already exactly 10.
    return out[:B] if b_pad != B else out


def init_params(key):
    """Deterministic init mimicking nn.Linear's default U(-1/sqrt(fan_in), 1/sqrt(fan_in)).
    Stored as (in, out) so the kernel computes x @ W (transpose of PyTorch layout)."""
    k1, k2, k3, k4 = jax.random.split(key, 4)
    bound1 = 1.0 / jnp.sqrt(jnp.float32(D_IN))
    bound2 = 1.0 / jnp.sqrt(jnp.float32(D_HID))
    w1 = jax.random.uniform(k1, (D_IN, D_HID), jnp.float32, -bound1, bound1)
    b1 = jax.random.uniform(k2, (D_HID,), jnp.float32, -bound1, bound1)
    w2 = jax.random.uniform(k3, (D_HID, D_OUT), jnp.float32, -bound2, bound2)
    b2 = jax.random.uniform(k4, (D_OUT,), jnp.float32, -bound2, bound2)
    return w1, b1, w2, b2


def _reference(x, w1, b1, w2, b2):
    """Plain-JAX reference mirroring the kernel's bf16-weight / f32-accumulate math."""
    xb = x.astype(jnp.bfloat16)
    h = jnp.maximum(
        jnp.dot(xb, w1.astype(jnp.bfloat16), preferred_element_type=jnp.float32)
        + b1.reshape(1, D_HID),
        0.0,
    ).astype(jnp.bfloat16)
    return (
        jnp.dot(h, w2.astype(jnp.bfloat16), preferred_element_type=jnp.float32)
        + b2.reshape(1, D_OUT)
    )


if __name__ == "__main__":
    key = jax.random.PRNGKey(0)
    pkey, xkey, xkey2 = jax.random.split(key, 3)
    w1, b1, w2, b2 = init_params(pkey)
    # One-time param prep (bf16 cast + lane padding) -- outside the forward path.
    w1_p, b1_p, w2_p, b2_p = prepare_params(w1, b1, w2, b2)

    # Small-batch / latency path (single 16-row tile).
    B = 8
    x = jax.random.normal(xkey, (B, D_IN), jnp.float32)
    out = jax.block_until_ready(mynet_forward(x, w1_p, b1_p, w2_p, b2_p))
    ref = _reference(x, w1, b1, w2, b2)
    assert out.shape == (B, D_OUT)
    assert jnp.allclose(out, ref, atol=1e-2, rtol=1e-2)

    # Multi-step grid + batch-padding path (tm=256, 3 grid steps) -- still small.
    B2 = 520
    x2 = jax.random.normal(xkey2, (B2, D_IN), jnp.float32)
    out2 = jax.block_until_ready(mynet_forward(x2, w1_p, b1_p, w2_p, b2_p))
    ref2 = _reference(x2, w1, b1, w2, b2)
    assert out2.shape == (B2, D_OUT)
    assert jnp.allclose(out2, ref2, atol=1e-2, rtol=1e-2)

    print("KERNEL_OK")
</pallas_src>

<mosaic_0001>
module attributes {stable_mosaic.version = 11 : i64} {
  func.func @mlp_kernel(%arg0: i32, %arg1: memref<16x256xf32, #tpu.memory_space<vmem>>, %arg2: memref<256x1024xbf16, #tpu.memory_space<vmem>>, %arg3: memref<1x1024xf32, #tpu.memory_space<vmem>>, %arg4: memref<1024x128xbf16, #tpu.memory_space<vmem>>, %arg5: memref<1x128xf32, #tpu.memory_space<vmem>>, %arg6: memref<16x10xf32, #tpu.memory_space<vmem>>) attributes {dimension_semantics = [#tpu.dimension_semantics<parallel>], iteration_bounds = array<i64: 1>, scalar_prefetch = 0 : i64, scratch_operands = 0 : i64, tpu.core_type = #tpu.core_type<tc>, window_params = [{transform_indices = @transform_0, window_bounds = array<i64: 16, 256>}, {pipeline_mode = #tpu.pipeline_mode<synchronous>, transform_indices = @transform_1, window_bounds = array<i64: 256, 1024>}, {pipeline_mode = #tpu.pipeline_mode<synchronous>, transform_indices = @transform_2, window_bounds = array<i64: 1, 1024>}, {pipeline_mode = #tpu.pipeline_mode<synchronous>, transform_indices = @transform_3, window_bounds = array<i64: 1024, 128>}, {pipeline_mode = #tpu.pipeline_mode<synchronous>, transform_indices = @transform_4, window_bounds = array<i64: 1, 128>}, {transform_indices = @transform_5, window_bounds = array<i64: 16, 10>}]} {
    %c0 = arith.constant 0 : index
    %c0_0 = arith.constant 0 : index
    %0 = vector.load %arg1[%c0, %c0_0] : memref<16x256xf32, #tpu.memory_space<vmem>>, vector<16x256xf32>
    %1 = arith.truncf %0 : vector<16x256xf32> to vector<16x256xbf16>
    %c0_1 = arith.constant 0 : index
    %c0_2 = arith.constant 0 : index
    %2 = vector.load %arg2[%c0_1, %c0_2] : memref<256x1024xbf16, #tpu.memory_space<vmem>>, vector<256x1024xbf16>
    %cst = arith.constant dense<0.000000e+00> : vector<16x1024xf32>
    %3 = tpu.matmul %1, %2, %cst {dimension_numbers = #tpu.dot_dimension_numbers<[1], [0], [0], [1], [0, 0, 1, 1], [], []>} : vector<16x256xbf16>, vector<256x1024xbf16>, vector<16x1024xf32> -> vector<16x1024xf32>
    %c0_3 = arith.constant 0 : index
    %c0_4 = arith.constant 0 : index
    %4 = vector.load %arg3[%c0_3, %c0_4] : memref<1x1024xf32, #tpu.memory_space<vmem>>, vector<1x1024xf32>
    %5 = vector.broadcast %4 : vector<1x1024xf32> to vector<16x1024xf32>
    %6 = arith.addf %3, %5 : vector<16x1024xf32>
    %cst_5 = arith.constant 0.000000e+00 : f32
    %7 = vector.broadcast %cst_5 : f32 to vector<16x1024xf32>
    %8 = arith.maximumf %6, %7 : vector<16x1024xf32>
    %9 = arith.truncf %8 : vector<16x1024xf32> to vector<16x1024xbf16>
    %c0_6 = arith.constant 0 : index
    %c0_7 = arith.constant 0 : index
    %10 = vector.load %arg4[%c0_6, %c0_7] : memref<1024x128xbf16, #tpu.memory_space<vmem>>, vector<1024x128xbf16>
    %cst_8 = arith.constant dense<0.000000e+00> : vector<16x128xf32>
    %11 = tpu.matmul %9, %10, %cst_8 {dimension_numbers = #tpu.dot_dimension_numbers<[1], [0], [0], [1], [0, 0, 1, 1], [], []>} : vector<16x1024xbf16>, vector<1024x128xbf16>, vector<16x128xf32> -> vector<16x128xf32>
    %c0_9 = arith.constant 0 : index
    %c0_10 = arith.constant 0 : index
    %12 = vector.load %arg5[%c0_9, %c0_10] : memref<1x128xf32, #tpu.memory_space<vmem>>, vector<1x128xf32>
    %13 = vector.broadcast %12 : vector<1x128xf32> to vector<16x128xf32>
    %14 = arith.addf %11, %13 : vector<16x128xf32>
    %15 = vector.extract_strided_slice %14 {offsets = [0, 0], sizes = [16, 10], strides = [1, 1]} : vector<16x128xf32> to vector<16x10xf32>
    %c0_11 = arith.constant 0 : index
    %c0_12 = arith.constant 0 : index
    %16 = vector.load %arg6[%c0_11, %c0_12] : memref<16x10xf32, #tpu.memory_space<vmem>>, vector<16x10xf32>
    tpu.vector_store %arg6[%c0_11, %c0_12], %15 {strides = array<i32>} : memref<16x10xf32, #tpu.memory_space<vmem>>, vector<16x10xf32>,
    return
  }
  func.func @transform_0(%arg0: i32) -> (i32, i32) {
    %c0_i32 = arith.constant 0 : i32
    %c0_i32_0 = arith.constant 0 : i32
    return %arg0, %c0_i32 : i32, i32
  }
  func.func @transform_1(%arg0: i32) -> (i32, i32) {
    %c0_i32 = arith.constant 0 : i32
    %c0_i32_0 = arith.constant 0 : i32
    %c0_i32_1 = arith.constant 0 : i32
    return %c0_i32, %c0_i32_0 : i32, i32
  }
  func.func @transform_2(%arg0: i32) -> (i32, i32) {
    %c0_i32 = arith.constant 0 : i32
    %c0_i32_0 = arith.constant 0 : i32
    %c0_i32_1 = arith.constant 0 : i32
    return %c0_i32, %c0_i32_0 : i32, i32
  }
  func.func @transform_3(%arg0: i32) -> (i32, i32) {
    %c0_i32 = arith.constant 0 : i32
    %c0_i32_0 = arith.constant 0 : i32
    %c0_i32_1 = arith.constant 0 : i32
    return %c0_i32, %c0_i32_0 : i32, i32
  }
  func.func @transform_4(%arg0: i32) -> (i32, i32) {
    %c0_i32 = arith.constant 0 : i32
    %c0_i32_0 = arith.constant 0 : i32
    %c0_i32_1 = arith.constant 0 : i32
    return %c0_i32, %c0_i32_0 : i32, i32
  }
  func.func @transform_5(%arg0: i32) -> (i32, i32) {
    %c0_i32 = arith.constant 0 : i32
    %c0_i32_0 = arith.constant 0 : i32
    return %arg0, %c0_i32 : i32, i32
  }
}

</mosaic_0001>

<llo_original>
// kernel: tpu_custom_call.1
$region0: #{tpu_custom_call.1}
  #allocation0 [shape = 'u32[]', space=smem, size = 0x4, offset = 0x4, fixed_abs, tag = 'smem constant byte address 0x4 - core index']
  #allocation1 [shape = 'u32[144,128]{1,0:T(1,128)}', space=vmem, size = 0x12000, scoped, tag = 'internal scratch']
  %s0 = inlined_call_operand.hbm [shape: f32[16,256], index: 0, kind: input, shape index: {}]
  %s1 = inlined_call_operand.hbm [shape: bf16[256,1024], index: 1, kind: input, shape index: {}]
  %s2 = inlined_call_operand.hbm [shape: f32[1,1024], index: 2, kind: input, shape index: {}]
  %s3 = inlined_call_operand.hbm [shape: bf16[1024,128], index: 3, kind: input, shape index: {}]
  %s4 = inlined_call_operand.vmem [shape: f32[1,128], index: 4, kind: input, shape index: {}]
  %s5 = inlined_call_operand.hbm [shape: f32[16,10], index: 5, kind: output, shape index: {}]
  %s6 = sld [smem:[#allocation0]]
  $region46: #{tpu_custom_call.1} parent=0
    _
  %s8 = ssub.s32 1, %s6
  %s9 = scalar_select 0, %s8, %s6
  $region1: #{tpu_custom_call.1} parent=0
    #allocation2 [shape = 'u8[16384]{0}', space=vmem, size = 0x4000, scoped, tag = 'input window, operand 0, single buffered']
    #allocation3 [shape = 's32[1]{0}', space=sflag, size = 0x4, scoped, tag = 'scoped memory for tpu_custom_call.1']
    #allocation4 [shape = 's32[1]{0}', space=sflag, size = 0x4, scoped, tag = 'scoped memory for tpu_custom_call.1']
    #allocation5 [shape = 'u8[524288]{0}', space=vmem, size = 0x80000, scoped, tag = 'input window, operand 1, single buffered']
    #allocation6 [shape = 's32[1]{0}', space=sflag, size = 0x4, scoped, tag = 'scoped memory for tpu_custom_call.1']
    #allocation7 [shape = 'u8[4096]{0}', space=vmem, size = 0x1000, scoped, tag = 'input window, operand 2, single buffered']
    #allocation8 [shape = 'u8[262144]{0}', space=vmem, size = 0x40000, scoped, tag = 'input window, operand 3, single buffered']
    #allocation9 [shape = 's32[1]{0}', space=sflag, size = 0x4, scoped, tag = 'scoped memory for tpu_custom_call.1']
    #allocation10 [shape = 'u8[8192]{0}', space=vmem, size = 0x2000, scoped, tag = 'output window, operand 0, single buffered']
    %10 = vsyncpa [#allocation3], 0
    %11 = vsyncpa [#allocation6], 0
    %12 = vsyncpa [#allocation9], 0
    %13 = vsyncpa [#allocation4], 0
    // Predicated region
    $region2: #{tpu_custom_call.1} parent=1 // pred_check
      _
    $region3: #{tpu_custom_call.1} parent=1 // pred_check_branch
      %15 = sbr.rel (0) target = $region5
    $region4: #{tpu_custom_call.1} parent=1 // pred_region
      %s17 = ssub.s32 512, 512
      %18 = vsyncadd [#allocation3], %s17
      %s19 = sshll.u32 [#allocation2], 4
      %s20 = int_to_ptr.vmem [resolvable:$true] %s19
      %25 = dma.hbm_to_vmem [thread:$0]  %s0, 512, %s20, [#allocation3], 256, 256, 16
    $region5: #{tpu_custom_call.1} parent=1 // pred_fallthru
      _
    // Predicated region
    $region6: #{tpu_custom_call.1} parent=1 // pred_check
      _
    $region7: #{tpu_custom_call.1} parent=1 // pred_check_branch
      %27 = sbr.rel (0) target = $region9
    $region8: #{tpu_custom_call.1} parent=1 // pred_region
      %s29 = ssub.s32 16384, 16384
      %30 = vsyncadd [#allocation6], %s29
      %s31 = sshll.u32 [#allocation5], 4
      %s32 = int_to_ptr.vmem [resolvable:$true] %s31
      %37 = dma.hbm_to_vmem [thread:$0]  %s1, 16384, %s32, [#allocation6], 512, 512, 32
    $region9: #{tpu_custom_call.1} parent=1 // pred_fallthru
      _
    // Predicated region
    $region10: #{tpu_custom_call.1} parent=1 // pred_check
      _
    $region11: #{tpu_custom_call.1} parent=1 // pred_check_branch
      %39 = sbr.rel (0) target = $region13
    $region12: #{tpu_custom_call.1} parent=1 // pred_region
      %s41 = ssub.s32 128, 128
      %42 = vsyncadd [#allocation6], %s41
      %s44 = sshll.u32 [#allocation7], 4
      %s45 = int_to_ptr.vmem [resolvable:$true] %s44
      %47 = dma.hbm_to_vmem [thread:$0]  %s2, 128, %s45, [#allocation6]
    $region13: #{tpu_custom_call.1} parent=1 // pred_fallthru
      _
    // Predicated region
    $region14: #{tpu_custom_call.1} parent=1 // pred_check
      _
    $region15: #{tpu_custom_call.1} parent=1 // pred_check_branch
      %49 = sbr.rel (0) target = $region17
    $region16: #{tpu_custom_call.1} parent=1 // pred_region
      %s51 = ssub.s32 8192, 8192
      %52 = vsyncadd [#allocation9], %s51
      %s53 = sshll.u32 [#allocation8], 4
      %s54 = int_to_ptr.vmem [resolvable:$true] %s53
      %59 = dma.hbm_to_vmem [thread:$0]  %s3, 8192, %s54, [#allocation9], 64, 64, 4
    $region17: #{tpu_custom_call.1} parent=1 // pred_fallthru
      _
    // Predicated region
    $region18: #{tpu_custom_call.1} parent=1 // pred_check
      _
    $region19: #{tpu_custom_call.1} parent=1 // pred_check_branch
      %61 = sbr.rel (0) target = $region21
    $region20: #{tpu_custom_call.1} parent=1 // pred_region
      _
    $region21: #{tpu_custom_call.1} parent=1 // pred_fallthru
      _
    // Predicated region
    $region22: #{tpu_custom_call.1} parent=1 // pred_check
      _
    $region23: #{tpu_custom_call.1} parent=1 // pred_check_branch
      %63 = sbr.rel (0) target = $region25
    $region24: #{tpu_custom_call.1} parent=1 // pred_region
      %64 = dma.done [#allocation3], 512
    $region25: #{tpu_custom_call.1} parent=1 // pred_fallthru
      _
    // Predicated region
    $region26: #{tpu_custom_call.1} parent=1 // pred_check
      _
    $region27: #{tpu_custom_call.1} parent=1 // pred_check_branch
      %66 = sbr.rel (0) target = $region29
    $region28: #{tpu_custom_call.1} parent=1 // pred_region
      %67 = dma.done [#allocation6], 16384
    $region29: #{tpu_custom_call.1} parent=1 // pred_fallthru
      _
    // Predicated region
    $region30: #{tpu_custom_call.1} parent=1 // pred_check
      _
    $region31: #{tpu_custom_call.1} parent=1 // pred_check_branch
      %69 = sbr.rel (0) target = $region33
    $region32: #{tpu_custom_call.1} parent=1 // pred_region
      %70 = dma.done [#allocation6], 128
    $region33: #{tpu_custom_call.1} parent=1 // pred_fallthru
      _
    // Predicated region
    $region34: #{tpu_custom_call.1} parent=1 // pred_check
      _
    $region35: #{tpu_custom_call.1} parent=1 // pred_check_branch
      %72 = sbr.rel (0) target = $region37
    $region36: #{tpu_custom_call.1} parent=1 // pred_region
      %73 = dma.done [#allocation9], 8192
    $region37: #{tpu_custom_call.1} parent=1 // pred_fallthru
      _
    %v75 = vld [vmem:[#allocation2] sm:$0xff]
    %v76 = vld [vmem:[#allocation2 + $0x8] sm:$0xff]
    %v77 = vld [vmem:[#allocation2 + $0x10] sm:$0xff]
    %v78 = vld [vmem:[#allocation2 + $0x18] sm:$0xff]
    %v79 = vpack.c.bf16 %v77, %v75
    %v80 = vpack.c.bf16 %v78, %v76
    %v81 = vld [vmem:[#allocation5] sm:$0xff]
    %v82 = vld [vmem:[#allocation5 + $0x8] sm:$0xff]
    %v83 = vld [vmem:[#allocation5 + $0x10] sm:$0xff]
    %v84 = vld [vmem:[#allocation5 + $0x18] sm:$0xff]
    %v85 = vld [vmem:[#allocation5 + $0x20] sm:$0xff]
    %v86 = vld [vmem:[#allocation5 + $0x28] sm:$0xff]
    %v87 = vld [vmem:[#allocation5 + $0x30] sm:$0xff]
    %v88 = vld [vmem:[#allocation5 + $0x38] sm:$0xff]
    %v89 = vld [vmem:[#allocation5 + $0x40] sm:$0xff]
    %v90 = vld [vmem:[#allocation5 + $0x48] sm:$0xff]
    %v91 = vld [vmem:[#allocation5 + $0x50] sm:$0xff]
    %v92 = vld [vmem:[#allocation5 + $0x58] sm:$0xff]
    %v93 = vld [vmem:[#allocation5 + $0x60] sm:$0xff]
    %v94 = vld [vmem:[#allocation5 + $0x68] sm:$0xff]
    %v95 = vld [vmem:[#allocation5 + $0x70] sm:$0xff]
    %v96 = vld [vmem:[#allocation5 + $0x78] sm:$0xff]
    %v97 = vld [vmem:[#allocation5 + $0x80] sm:$0xff]
    %v98 = vld [vmem:[#allocation5 + $0x88] sm:$0xff]
    %v99 = vld [vmem:[#allocation5 + $0x90] sm:$0xff]
    %v100 = vld [vmem:[#allocation5 + $0x98] sm:$0xff]
    %v101 = vld [vmem:[#allocation5 + $0xa0] sm:$0xff]
    %v102 = vld [vmem:[#allocation5 + $0xa8] sm:$0xff]
    %v103 = vld [vmem:[#allocation5 + $0xb0] sm:$0xff]
    %v104 = vld [vmem:[#allocation5 + $0xb8] sm:$0xff]
    %v105 = vld [vmem:[#allocation5 + $0xc0] sm:$0xff]
    %v106 = vld [vmem:[#allocation5 + $0xc8] sm:$0xff]
    %v107 = vld [vmem:[#allocation5 + $0xd0] sm:$0xff]
    %v108 = vld [vmem:[#allocation5 + $0xd8] sm:$0xff]
    %v109 = vld [vmem:[#allocation5 + $0xe0] sm:$0xff]
    %v110 = vld [vmem:[#allocation5 + $0xe8] sm:$0xff]
    %v111 = vld [vmem:[#allocation5 + $0xf0] sm:$0xff]
    %v112 = vld [vmem:[#allocation5 + $0xf8] sm:$0xff]
    %v113 = vld [vmem:[#allocation5 + $0x100] sm:$0xff]
    %v114 = vld [vmem:[#allocation5 + $0x108] sm:$0xff]
    %v115 = vld [vmem:[#allocation5 + $0x110] sm:$0xff]
    %v116 = vld [vmem:[#allocation5 + $0x118] sm:$0xff]
    %v117 = vld [vmem:[#allocation5 + $0x120] sm:$0xff]
    %v118 = vld [vmem:[#allocation5 + $0x128] sm:$0xff]
    %v119 = vld [vmem:[#allocation5 + $0x130] sm:$0xff]
    %v120 = vld [vmem:[#allocation5 + $0x138] sm:$0xff]
    %v121 = vld [vmem:[#allocation5 + $0x140] sm:$0xff]
    %v122 = vld [vmem:[#allocation5 + $0x148] sm:$0xff]
    %v123 = vld [vmem:[#allocation5 + $0x150] sm:$0xff]
    %v124 = vld [vmem:[#allocation5 + $0x158] sm:$0xff]
    %v125 = vld [vmem:[#allocation5 + $0x160] sm:$0xff]
    %v126 = vld [vmem:[#allocation5 + $0x168] sm:$0xff]
    %v127 = vld [vmem:[#allocation5 + $0x170] sm:$0xff]
    %v128 = vld [vmem:[#allocation5 + $0x178] sm:$0xff]
    %v129 = vld [vmem:[#allocation5 + $0x180] sm:$0xff]
    %v130 = vld [vmem:[#allocation5 + $0x188] sm:$0xff]
    %v131 = vld [vmem:[#allocation5 + $0x190] sm:$0xff]
    %v132 = vld [vmem:[#allocation5 + $0x198] sm:$0xff]
    %v133 = vld [vmem:[#allocation5 + $0x1a0] sm:$0xff]
    %v134 = vld [vmem:[#allocation5 + $0x1a8] sm:$0xff]
    %v135 = vld [vmem:[#allocation5 + $0x1b0] sm:$0xff]
    %v136 = vld [vmem:[#allocation5 + $0x1b8] sm:$0xff]
    %v137 = vld [vmem:[#allocation5 + $0x1c0] sm:$0xff]
    %v138 = vld [vmem:[#allocation5 + $0x1c8] sm:$0xff]
    %v139 = vld [vmem:[#allocation5 + $0x1d0] sm:$0xff]
    %v140 = vld [vmem:[#allocation5 + $0x1d8] sm:$0xff]
    %v141 = vld [vmem:[#allocation5 + $0x1e0] sm:$0xff]
    %v142 = vld [vmem:[#allocation5 + $0x1e8] sm:$0xff]
    %v143 = vld [vmem:[#allocation5 + $0x1f0] sm:$0xff]
    %v144 = vld [vmem:[#allocation5 + $0x1f8] sm:$0xff]
    %v145 = vld [vmem:[#allocation5 + $0x200] sm:$0xff]
    %v146 = vld [vmem:[#allocation5 + $0x208] sm:$0xff]
    %v147 = vld [vmem:[#allocation5 + $0x210] sm:$0xff]
    %v148 = vld [vmem:[#allocation5 + $0x218] sm:$0xff]
    %v149 = vld [vmem:[#allocation5 + $0x220] sm:$0xff]
    %v150 = vld [vmem:[#allocation5 + $0x228] sm:$0xff]
    %v151 = vld [vmem:[#allocation5 + $0x230] sm:$0xff]
    %v152 = vld [vmem:[#allocation5 + $0x238] sm:$0xff]
    %v153 = vld [vmem:[#allocation5 + $0x240] sm:$0xff]
    %v154 = vld [vmem:[#allocation5 + $0x248] sm:$0xff]
    %v155 = vld [vmem:[#allocation5 + $0x250] sm:$0xff]
    %v156 = vld [vmem:[#allocation5 + $0x258] sm:$0xff]
    %v157 = vld [vmem:[#allocation5 + $0x260] sm:$0xff]
    %v158 = vld [vmem:[#allocation5 + $0x268] sm:$0xff]
    %v159 = vld [vmem:[#allocation5 + $0x270] sm:$0xff]
    %v160 = vld [vmem:[#allocation5 + $0x278] sm:$0xff]
    %v161 = vld [vmem:[#allocation5 + $0x280] sm:$0xff]
    %v162 = vld [vmem:[#allocation5 + $0x288] sm:$0xff]
    %v163 = vld [vmem:[#allocation5 + $0x290] sm:$0xff]
    %v164 = vld [vmem:[#allocation5 + $0x298] sm:$0xff]
    %v165 = vld [vmem:[#allocation5 + $0x2a0] sm:$0xff]
    %v166 = vld [vmem:[#allocation5 + $0x2a8] sm:$0xff]
    %v167 = vld [vmem:[#allocation5 + $0x2b0] sm:$0xff]
    %v168 = vld [vmem:[#allocation5 + $0x2b8] sm:$0xff]
    %v169 = vld [vmem:[#allocation5 + $0x2c0] sm:$0xff]
    %v170 = vld [vmem:[#allocation5 + $0x2c8] sm:$0xff]
    %v171 = vld [vmem:[#allocation5 + $0x2d0] sm:$0xff]
    %v172 = vld [vmem:[#allocation5 + $0x2d8] sm:$0xff]
    %v173 = vld [vmem:[#allocation5 + $0x2e0] sm:$0xff]
    %v174 = vld [vmem:[#allocation5 + $0x2e8] sm:$0xff]
    %v175 = vld [vmem:[#allocation5 + $0x2f0] sm:$0xff]
    %v176 = vld [vmem:[#allocation5 + $0x2f8] sm:$0xff]
    %v177 = vld [vmem:[#allocation5 + $0x300] sm:$0xff]
    %v178 = vld [vmem:[#allocation5 + $0x308] sm:$0xff]
    %v179 = vld [vmem:[#allocation5 + $0x310] sm:$0xff]
    %v180 = vld [vmem:[#allocation5 + $0x318] sm:$0xff]
    %v181 = vld [vmem:[#allocation5 + $0x320] sm:$0xff]
    %v182 = vld [vmem:[#allocation5 + $0x328] sm:$0xff]
    %v183 = vld [vmem:[#allocation5 + $0x330] sm:$0xff]
    %v184 = vld [vmem:[#allocation5 + $0x338] sm:$0xff]
    %v185 = vld [vmem:[#allocation5 + $0x340] sm:$0xff]
    %v186 = vld [vmem:[#allocation5 + $0x348] sm:$0xff]
    %v187 = vld [vmem:[#allocation5 + $0x350] sm:$0xff]
    %v188 = vld [vmem:[#allocation5 + $0x358] sm:$0xff]
    %v189 = vld [vmem:[#allocation5 + $0x360] sm:$0xff]
    %v190 = vld [vmem:[#allocation5 + $0x368] sm:$0xff]
    %v191 = vld [vmem:[#allocation5 + $0x370] sm:$0xff]
    %v192 = vld [vmem:[#allocation5 + $0x378] sm:$0xff]
    %v193 = vld [vmem:[#allocation5 + $0x380] sm:$0xff]
    %v194 = vld [vmem:[#allocation5 + $0x388] sm:$0xff]
    %v195 = vld [vmem:[#allocation5 + $0x390] sm:$0xff]
    %v196 = vld [vmem:[#allocation5 + $0x398] sm:$0xff]
    %v197 = vld [vmem:[#allocation5 + $0x3a0] sm:$0xff]
    %v198 = vld [vmem:[#allocation5 + $0x3a8] sm:$0xff]
    %v199 = vld [vmem:[#allocation5 + $0x3b0] sm:$0xff]
    %v200 = vld [vmem:[#allocation5 + $0x3b8] sm:$0xff]
    %v201 = vld [vmem:[#allocation5 + $0x3c0] sm:$0xff]
    %v202 = vld [vmem:[#allocation5 + $0x3c8] sm:$0xff]
    %v203 = vld [vmem:[#allocation5 + $0x3d0] sm:$0xff]
    %v204 = vld [vmem:[#allocation5 + $0x3d8] sm:$0xff]
    %v205 = vld [vmem:[#allocation5 + $0x3e0] sm:$0xff]
    %v206 = vld [vmem:[#allocation5 + $0x3e8] sm:$0xff]
    %v207 = vld [vmem:[#allocation5 + $0x3f0] sm:$0xff]
    %v208 = vld [vmem:[#allocation5 + $0x3f8] sm:$0xff]
    %v209 = vld [vmem:[#allocation7] sm:$0xff]
    %v211 = vlaneseq
    %v212 = vshrl.u32 %v211, 7
    %v213 = vsub.s32 0, %v212
    %v214 = vrot.slane %v209, %v213
    %v215 = vlaneseq
    %v216 = vshrl.u32 %v215, 7
    %v217 = vsub.s32 1, %v216
    %v218 = vrot.slane %v209, %v217
    %v219 = vlaneseq
    %v220 = vshrl.u32 %v219, 7
    %v221 = vsub.s32 2, %v220
    %v222 = vrot.slane %v209, %v221
    %v223 = vlaneseq
    %v224 = vshrl.u32 %v223, 7
    %v225 = vsub.s32 3, %v224
    %v226 = vrot.slane %v209, %v225
    %v227 = vlaneseq
    %v228 = vshrl.u32 %v227, 7
    %v229 = vsub.s32 4, %v228
    %v230 = vrot.slane %v209, %v229
    %v231 = vlaneseq
    %v232 = vshrl.u32 %v231, 7
    %v233 = vsub.s32 5, %v232
    %v234 = vrot.slane %v209, %v233
    %v235 = vlaneseq
    %v236 = vshrl.u32 %v235, 7
    %v237 = vsub.s32 6, %v236
    %v238 = vrot.slane %v209, %v237
    %v239 = vlaneseq
    %v240 = vshrl.u32 %v239, 7
    %v241 = vsub.s32 7, %v240
    %v242 = vrot.slane %v209, %v241
    %v379 = vunpack.c.l.b16 %v81
    %v380 = vunpack.c.h.b16 %v81
    %v381 = vunpack.c.l.b16 %v82
    %v382 = vunpack.c.h.b16 %v82
    %v383 = vunpack.c.l.b16 %v83
    %v384 = vunpack.c.h.b16 %v83
    %v385 = vunpack.c.l.b16 %v84
    %v386 = vunpack.c.h.b16 %v84
    %v387 = vunpack.c.l.b16 %v85
    %v388 = vunpack.c.h.b16 %v85
    %v389 = vunpack.c.l.b16 %v86
    %v390 = vunpack.c.h.b16 %v86
    %v391 = vunpack.c.l.b16 %v87
    %v392 = vunpack.c.h.b16 %v87
    %v393 = vunpack.c.l.b16 %v88
    %v394 = vunpack.c.h.b16 %v88
    %v395 = vunpack.c.l.b16 %v89
    %v396 = vunpack.c.h.b16 %v89
    %v397 = vunpack.c.l.b16 %v90
    %v398 = vunpack.c.h.b16 %v90
    %v399 = vunpack.c.l.b16 %v91
    %v400 = vunpack.c.h.b16 %v91
    %v401 = vunpack.c.l.b16 %v92
    %v402 = vunpack.c.h.b16 %v92
    %v403 = vunpack.c.l.b16 %v93
    %v404 = vunpack.c.h.b16 %v93
    %v405 = vunpack.c.l.b16 %v94
    %v406 = vunpack.c.h.b16 %v94
    %v407 = vunpack.c.l.b16 %v95
    %v408 = vunpack.c.h.b16 %v95
    %v409 = vunpack.c.l.b16 %v96
    %v410 = vunpack.c.h.b16 %v96
    %v411 = vunpack.c.l.b16 %v97
    %v412 = vunpack.c.h.b16 %v97
    %v413 = vunpack.c.l.b16 %v98
    %v414 = vunpack.c.h.b16 %v98
    %v415 = vunpack.c.l.b16 %v99
    %v416 = vunpack.c.h.b16 %v99
    %v417 = vunpack.c.l.b16 %v100
    %v418 = vunpack.c.h.b16 %v100
    %v419 = vunpack.c.l.b16 %v101
    %v420 = vunpack.c.h.b16 %v101
    %v421 = vunpack.c.l.b16 %v102
    %v422 = vunpack.c.h.b16 %v102
    %v423 = vunpack.c.l.b16 %v103
    %v424 = vunpack.c.h.b16 %v103
    %v425 = vunpack.c.l.b16 %v104
    %v426 = vunpack.c.h.b16 %v104
    %v427 = vunpack.c.l.b16 %v105
    %v428 = vunpack.c.h.b16 %v105
    %v429 = vunpack.c.l.b16 %v106
    %v430 = vunpack.c.h.b16 %v106
    %v431 = vunpack.c.l.b16 %v107
    %v432 = vunpack.c.h.b16 %v107
    %v433 = vunpack.c.l.b16 %v108
    %v434 = vunpack.c.h.b16 %v108
    %v435 = vunpack.c.l.b16 %v109
    %v436 = vunpack.c.h.b16 %v109
    %v437 = vunpack.c.l.b16 %v110
    %v438 = vunpack.c.h.b16 %v110
    %v439 = vunpack.c.l.b16 %v111
    %v440 = vunpack.c.h.b16 %v111
    %v441 = vunpack.c.l.b16 %v112
    %v442 = vunpack.c.h.b16 %v112
    %v443 = vunpack.c.l.b16 %v113
    %v444 = vunpack.c.h.b16 %v113
    %v445 = vunpack.c.l.b16 %v114
    %v446 = vunpack.c.h.b16 %v114
    %v447 = vunpack.c.l.b16 %v115
    %v448 = vunpack.c.h.b16 %v115
    %v449 = vunpack.c.l.b16 %v116
    %v450 = vunpack.c.h.b16 %v116
    %v451 = vunpack.c.l.b16 %v117
    %v452 = vunpack.c.h.b16 %v117
    %v453 = vunpack.c.l.b16 %v118
    %v454 = vunpack.c.h.b16 %v118
    %v455 = vunpack.c.l.b16 %v119
    %v456 = vunpack.c.h.b16 %v119
    %v457 = vunpack.c.l.b16 %v120
    %v458 = vunpack.c.h.b16 %v120
    %v459 = vunpack.c.l.b16 %v121
    %v460 = vunpack.c.h.b16 %v121
    %v461 = vunpack.c.l.b16 %v122
    %v462 = vunpack.c.h.b16 %v122
    %v463 = vunpack.c.l.b16 %v123
    %v464 = vunpack.c.h.b16 %v123
    %v465 = vunpack.c.l.b16 %v124
    %v466 = vunpack.c.h.b16 %v124
    %v467 = vunpack.c.l.b16 %v125
    %v468 = vunpack.c.h.b16 %v125
    %v469 = vunpack.c.l.b16 %v126
    %v470 = vunpack.c.h.b16 %v126
    %v471 = vunpack.c.l.b16 %v127
    %v472 = vunpack.c.h.b16 %v127
    %v473 = vunpack.c.l.b16 %v128
    %v474 = vunpack.c.h.b16 %v128
    %v475 = vunpack.c.l.b16 %v129
    %v476 = vunpack.c.h.b16 %v129
    %v477 = vunpack.c.l.b16 %v130
    %v478 = vunpack.c.h.b16 %v130
    %v479 = vunpack.c.l.b16 %v131
    %v480 = vunpack.c.h.b16 %v131
    %v481 = vunpack.c.l.b16 %v132
    %v482 = vunpack.c.h.b16 %v132
    %v483 = vunpack.c.l.b16 %v133
    %v484 = vunpack.c.h.b16 %v133
    %v485 = vunpack.c.l.b16 %v134
    %v486 = vunpack.c.h.b16 %v134
    %v487 = vunpack.c.l.b16 %v135
    %v488 = vunpack.c.h.b16 %v135
    %v489 = vunpack.c.l.b16 %v136
    %v490 = vunpack.c.h.b16 %v136
    %v491 = vunpack.c.l.b16 %v137
    %v492 = vunpack.c.h.b16 %v137
    %v493 = vunpack.c.l.b16 %v138
    %v494 = vunpack.c.h.b16 %v138
    %v495 = vunpack.c.l.b16 %v139
    %v496 = vunpack.c.h.b16 %v139
    %v497 = vunpack.c.l.b16 %v140
    %v498 = vunpack.c.h.b16 %v140
    %v499 = vunpack.c.l.b16 %v141
    %v500 = vunpack.c.h.b16 %v141
    %v501 = vunpack.c.l.b16 %v142
    %v502 = vunpack.c.h.b16 %v142
    %v503 = vunpack.c.l.b16 %v143
    %v504 = vunpack.c.h.b16 %v143
    %v505 = vunpack.c.l.b16 %v144
    %v506 = vunpack.c.h.b16 %v144
    %v507 = vunpack.c.l.b16 %v145
    %v508 = vunpack.c.h.b16 %v145
    %v509 = vunpack.c.l.b16 %v146
    %v510 = vunpack.c.h.b16 %v146
    %v511 = vunpack.c.l.b16 %v147
    %v512 = vunpack.c.h.b16 %v147
    %v513 = vunpack.c.l.b16 %v148
    %v514 = vunpack.c.h.b16 %v148
    %v515 = vunpack.c.l.b16 %v149
    %v516 = vunpack.c.h.b16 %v149
    %v517 = vunpack.c.l.b16 %v150
    %v518 = vunpack.c.h.b16 %v150
    %v519 = vunpack.c.l.b16 %v151
    %v520 = vunpack.c.h.b16 %v151
    %v521 = vunpack.c.l.b16 %v152
    %v522 = vunpack.c.h.b16 %v152
    %v523 = vunpack.c.l.b16 %v153
    %v524 = vunpack.c.h.b16 %v153
    %v525 = vunpack.c.l.b16 %v154
    %v526 = vunpack.c.h.b16 %v154
    %v527 = vunpack.c.l.b16 %v155
    %v528 = vunpack.c.h.b16 %v155
    %v529 = vunpack.c.l.b16 %v156
    %v530 = vunpack.c.h.b16 %v156
    %v531 = vunpack.c.l.b16 %v157
    %v532 = vunpack.c.h.b16 %v157
    %v533 = vunpack.c.l.b16 %v158
    %v534 = vunpack.c.h.b16 %v158
    %v535 = vunpack.c.l.b16 %v159
    %v536 = vunpack.c.h.b16 %v159
    %v537 = vunpack.c.l.b16 %v160
    %v538 = vunpack.c.h.b16 %v160
    %v539 = vunpack.c.l.b16 %v161
    %v540 = vunpack.c.h.b16 %v161
    %v541 = vunpack.c.l.b16 %v162
    %v542 = vunpack.c.h.b16 %v162
    %v543 = vunpack.c.l.b16 %v163
    %v544 = vunpack.c.h.b16 %v163
    %v545 = vunpack.c.l.b16 %v164
    %v546 = vunpack.c.h.b16 %v164
    %v547 = vunpack.c.l.b16 %v165
    %v548 = vunpack.c.h.b16 %v165
    %v549 = vunpack.c.l.b16 %v166
    %v550 = vunpack.c.h.b16 %v166
    %v551 = vunpack.c.l.b16 %v167
    %v552 = vunpack.c.h.b16 %v167
    %v553 = vunpack.c.l.b16 %v168
    %v554 = vunpack.c.h.b16 %v168
    %v555 = vunpack.c.l.b16 %v169
    %v556 = vunpack.c.h.b16 %v169
    %v557 = vunpack.c.l.b16 %v170
    %v558 = vunpack.c.h.b16 %v170
    %v559 = vunpack.c.l.b16 %v171
    %v560 = vunpack.c.h.b16 %v171
    %v561 = vunpack.c.l.b16 %v172
    %v562 = vunpack.c.h.b16 %v172
    %v563 = vunpack.c.l.b16 %v173
    %v564 = vunpack.c.h.b16 %v173
    %v565 = vunpack.c.l.b16 %v174
    %v566 = vunpack.c.h.b16 %v174
    %v567 = vunpack.c.l.b16 %v175
    %v568 = vunpack.c.h.b16 %v175
    %v569 = vunpack.c.l.b16 %v176
    %v570 = vunpack.c.h.b16 %v176
    %v571 = vunpack.c.l.b16 %v177
    %v572 = vunpack.c.h.b16 %v177
    %v573 = vunpack.c.l.b16 %v178
    %v574 = vunpack.c.h.b16 %v178
    %v575 = vunpack.c.l.b16 %v179
    %v576 = vunpack.c.h.b16 %v179
    %v577 = vunpack.c.l.b16 %v180
    %v578 = vunpack.c.h.b16 %v180
    %v579 = vunpack.c.l.b16 %v181
    %v580 = vunpack.c.h.b16 %v181
    %v581 = vunpack.c.l.b16 %v182
    %v582 = vunpack.c.h.b16 %v182
    %v583 = vunpack.c.l.b16 %v183
    %v584 = vunpack.c.h.b16 %v183
    %v585 = vunpack.c.l.b16 %v184
    %v586 = vunpack.c.h.b16 %v184
    %v587 = vunpack.c.l.b16 %v185
    %v588 = vunpack.c.h.b16 %v185
    %v589 = vunpack.c.l.b16 %v186
    %v590 = vunpack.c.h.b16 %v186
    %v591 = vunpack.c.l.b16 %v187
    %v592 = vunpack.c.h.b16 %v187
    %v593 = vunpack.c.l.b16 %v188
    %v594 = vunpack.c.h.b16 %v188
    %v595 = vunpack.c.l.b16 %v189
    %v596 = vunpack.c.h.b16 %v189
    %v597 = vunpack.c.l.b16 %v190
    %v598 = vunpack.c.h.b16 %v190
    %v599 = vunpack.c.l.b16 %v191
    %v600 = vunpack.c.h.b16 %v191
    %v601 = vunpack.c.l.b16 %v192
    %v602 = vunpack.c.h.b16 %v192
    %v603 = vunpack.c.l.b16 %v193
    %v604 = vunpack.c.h.b16 %v193
    %v605 = vunpack.c.l.b16 %v194
    %v606 = vunpack.c.h.b16 %v194
    %v607 = vunpack.c.l.b16 %v195
    %v608 = vunpack.c.h.b16 %v195
    %v609 = vunpack.c.l.b16 %v196
    %v610 = vunpack.c.h.b16 %v196
    %v611 = vunpack.c.l.b16 %v197
    %v612 = vunpack.c.h.b16 %v197
    %v613 = vunpack.c.l.b16 %v198
    %v614 = vunpack.c.h.b16 %v198
    %v615 = vunpack.c.l.b16 %v199
    %v616 = vunpack.c.h.b16 %v199
    %v617 = vunpack.c.l.b16 %v200
    %v618 = vunpack.c.h.b16 %v200
    %v619 = vunpack.c.l.b16 %v201
    %v620 = vunpack.c.h.b16 %v201
    %v621 = vunpack.c.l.b16 %v202
    %v622 = vunpack.c.h.b16 %v202
    %v623 = vunpack.c.l.b16 %v203
    %v624 = vunpack.c.h.b16 %v203
    %v625 = vunpack.c.l.b16 %v204
    %v626 = vunpack.c.h.b16 %v204
    %v627 = vunpack.c.l.b16 %v205
    %v628 = vunpack.c.h.b16 %v205
    %v629 = vunpack.c.l.b16 %v206
    %v630 = vunpack.c.h.b16 %v206
    %v631 = vunpack.c.l.b16 %v207
    %v632 = vunpack.c.h.b16 %v207
    %v633 = vunpack.c.l.b16 %v208
    %v634 = vunpack.c.h.b16 %v208
    %v635 = vpack.c.b16 %v387, %v379
    %v636 = vpack.c.b16 %v388, %v380
    %v637 = vpack.c.b16 %v389, %v381
    %v638 = vpack.c.b16 %v390, %v382
    %v639 = vpack.c.b16 %v391, %v383
    %v640 = vpack.c.b16 %v392, %v384
    %v641 = vpack.c.b16 %v393, %v385
    %v642 = vpack.c.b16 %v394, %v386
    %v643 = vpack.c.b16 %v403, %v395
    %v644 = vpack.c.b16 %v404, %v396
    %v645 = vpack.c.b16 %v405, %v397
    %v646 = vpack.c.b16 %v406, %v398
    %v647 = vpack.c.b16 %v407, %v399
    %v648 = vpack.c.b16 %v408, %v400
    %v649 = vpack.c.b16 %v409, %v401
    %v650 = vpack.c.b16 %v410, %v402
    %v651 = vpack.c.b16 %v419, %v411
    %v652 = vpack.c.b16 %v420, %v412
    %v653 = vpack.c.b16 %v421, %v413
    %v654 = vpack.c.b16 %v422, %v414
    %v655 = vpack.c.b16 %v423, %v415
    %v656 = vpack.c.b16 %v424, %v416
    %v657 = vpack.c.b16 %v425, %v417
    %v658 = vpack.c.b16 %v426, %v418
    %v659 = vpack.c.b16 %v435, %v427
    %v660 = vpack.c.b16 %v436, %v428
    %v661 = vpack.c.b16 %v437, %v429
    %v662 = vpack.c.b16 %v438, %v430
    %v663 = vpack.c.b16 %v439, %v431
    %v664 = vpack.c.b16 %v440, %v432
    %v665 = vpack.c.b16 %v441, %v433
    %v666 = vpack.c.b16 %v442, %v434
    %v667 = vpack.c.b16 %v451, %v443
    %v668 = vpack.c.b16 %v452, %v444
    %v669 = vpack.c.b16 %v453, %v445
    %v670 = vpack.c.b16 %v454, %v446
    %v671 = vpack.c.b16 %v455, %v447
    %v672 = vpack.c.b16 %v456, %v448
    %v673 = vpack.c.b16 %v457, %v449
    %v674 = vpack.c.b16 %v458, %v450
    %v675 = vpack.c.b16 %v467, %v459
    %v676 = vpack.c.b16 %v468, %v460
    %v677 = vpack.c.b16 %v469, %v461
    %v678 = vpack.c.b16 %v470, %v462
    %v679 = vpack.c.b16 %v471, %v463
    %v680 = vpack.c.b16 %v472, %v464
    %v681 = vpack.c.b16 %v473, %v465
    %v682 = vpack.c.b16 %v474, %v466
    %v683 = vpack.c.b16 %v483, %v475
    %v684 = vpack.c.b16 %v484, %v476
    %v685 = vpack.c.b16 %v485, %v477
    %v686 = vpack.c.b16 %v486, %v478
    %v687 = vpack.c.b16 %v487, %v479
    %v688 = vpack.c.b16 %v488, %v480
    %v689 = vpack.c.b16 %v489, %v481
    %v690 = vpack.c.b16 %v490, %v482
    %v691 = vpack.c.b16 %v499, %v491
    %v692 = vpack.c.b16 %v500, %v492
    %v693 = vpack.c.b16 %v501, %v493
    %v694 = vpack.c.b16 %v502, %v494
    %v695 = vpack.c.b16 %v503, %v495
    %v696 = vpack.c.b16 %v504, %v496
    %v697 = vpack.c.b16 %v505, %v497
    %v698 = vpack.c.b16 %v506, %v498
    %v699 = vpack.c.b16 %v515, %v507
    %v700 = vpack.c.b16 %v516, %v508
    %v701 = vpack.c.b16 %v517, %v509
    %v702 = vpack.c.b16 %v518, %v510
    %v703 = vpack.c.b16 %v519, %v511
    %v704 = vpack.c.b16 %v520, %v512
    %v705 = vpack.c.b16 %v521, %v513
    %v706 = vpack.c.b16 %v522, %v514
    %v707 = vpack.c.b16 %v531, %v523
    %v708 = vpack.c.b16 %v532, %v524
    %v709 = vpack.c.b16 %v533, %v525
    %v710 = vpack.c.b16 %v534, %v526
    %v711 = vpack.c.b16 %v535, %v527
    %v712 = vpack.c.b16 %v536, %v528
    %v713 = vpack.c.b16 %v537, %v529
    %v714 = vpack.c.b16 %v538, %v530
    %v715 = vpack.c.b16 %v547, %v539
    %v716 = vpack.c.b16 %v548, %v540
    %v717 = vpack.c.b16 %v549, %v541
    %v718 = vpack.c.b16 %v550, %v542
    %v719 = vpack.c.b16 %v551, %v543
    %v720 = vpack.c.b16 %v552, %v544
    %v721 = vpack.c.b16 %v553, %v545
    %v722 = vpack.c.b16 %v554, %v546
    %v723 = vpack.c.b16 %v563, %v555
    %v724 = vpack.c.b16 %v564, %v556
    %v725 = vpack.c.b16 %v565, %v557
    %v726 = vpack.c.b16 %v566, %v558
    %v727 = vpack.c.b16 %v567, %v559
    %v728 = vpack.c.b16 %v568, %v560
    %v729 = vpack.c.b16 %v569, %v561
    %v730 = vpack.c.b16 %v570, %v562
    %v731 = vpack.c.b16 %v579, %v571
    %v732 = vpack.c.b16 %v580, %v572
    %v733 = vpack.c.b16 %v581, %v573
    %v734 = vpack.c.b16 %v582, %v574
    %v735 = vpack.c.b16 %v583, %v575
    %v736 = vpack.c.b16 %v584, %v576
    %v737 = vpack.c.b16 %v585, %v577
    %v738 = vpack.c.b16 %v586, %v578
    %v739 = vpack.c.b16 %v595, %v587
    %v740 = vpack.c.b16 %v596, %v588
    %v741 = vpack.c.b16 %v597, %v589
    %v742 = vpack.c.b16 %v598, %v590
    %v743 = vpack.c.b16 %v599, %v591
    %v744 = vpack.c.b16 %v600, %v592
    %v745 = vpack.c.b16 %v601, %v593
    %v746 = vpack.c.b16 %v602, %v594
    %v747 = vpack.c.b16 %v611, %v603
    %v748 = vpack.c.b16 %v612, %v604
    %v749 = vpack.c.b16 %v613, %v605
    %v750 = vpack.c.b16 %v614, %v606
    %v751 = vpack.c.b16 %v615, %v607
    %v752 = vpack.c.b16 %v616, %v608
    %v753 = vpack.c.b16 %v617, %v609
    %v754 = vpack.c.b16 %v618, %v610
    %v755 = vpack.c.b16 %v627, %v619
    %v756 = vpack.c.b16 %v628, %v620
    %v757 = vpack.c.b16 %v629, %v621
    %v758 = vpack.c.b16 %v630, %v622
    %v759 = vpack.c.b16 %v631, %v623
    %v760 = vpack.c.b16 %v632, %v624
    %v761 = vpack.c.b16 %v633, %v625
    %v762 = vpack.c.b16 %v634, %v626
    %891 = vmatprep.subr.bf16.mxu0 %v692
    %892 = vmatpush1.bf16.msra.mxu0 %v691
    %893 = vmatprep.subr.bf16.mxu0 %v684
    %894 = vmatpush1.bf16.msra.mxu0 %v683
    %895 = vmatprep.subr.bf16.mxu0 %v676
    %896 = vmatpush1.bf16.msra.mxu0 %v675
    %897 = vmatprep.subr.bf16.mxu0 %v668
    %898 = vmatpush1.bf16.msra.mxu0 %v667
    %899 = vmatprep.subr.bf16.mxu0 %v660
    %900 = vmatpush1.bf16.msra.mxu0 %v659
    %901 = vmatprep.subr.bf16.mxu0 %v652
    %902 = vmatpush1.bf16.msra.mxu0 %v651
    %903 = vmatprep.subr.bf16.mxu0 %v644
    %904 = vmatpush1.bf16.msra.mxu0 %v643
    %905 = vmatprep.subr.bf16.mxu0 %v636
    %906 = vmatpush1.bf16.msra.mxu0 %v635
    %907 = vmatprep.subr.bf16.mxu0 %v756
    %908 = vmatpush2.bf16.msra.mxu0 %v755
    %909 = vmatprep.subr.bf16.mxu0 %v748
    %910 = vmatpush2.bf16.msra.mxu0 %v747
    %911 = vmatprep.subr.bf16.mxu0 %v740
    %912 = vmatpush2.bf16.msra.mxu0 %v739
    %913 = vmatprep.subr.bf16.mxu0 %v732
    %914 = vmatpush2.bf16.msra.mxu0 %v731
    %915 = vmatprep.subr.bf16.mxu0 %v724
    %916 = vmatpush2.bf16.msra.mxu0 %v723
    %917 = vmatprep.subr.bf16.mxu0 %v716
    %918 = vmatpush2.bf16.msra.mxu0 %v715
    %919 = vmatprep.subr.bf16.mxu0 %v708
    %920 = vmatpush2.bf16.msra.mxu0 %v707
    %921 = vmatprep.subr.bf16.mxu0 %v700
    %922 = vmatpush2.bf16.msra.mxu0 %v699
    %923 = vmatprep.mubr.bf16.mxu0 %v80
    %924 = vmatmul.mubr.bf16.gmra.mxu0 %v79
    %v925 = vpop.f32.mrf.mxu0
    %v926 = vadd.f32 %v214, %v925
    %v927 = vpop.f32.mrf.mxu0
    %v928 = vadd.f32 %v218, %v927
    %v929 = vpop.f32.mrf.mxu0
    %v930 = vadd.f32 %v214, %v929
    %v931 = vpop.f32.mrf.mxu0
    %v932 = vadd.f32 %v218, %v931
    %933 = vdwg.mxu0
    %934 = vmatprep.subr.bf16.mxu0 %v694
    %935 = vmatpush1.bf16.msra.mxu0 %v693
    %936 = vmatprep.subr.bf16.mxu0 %v686
    %937 = vmatpush1.bf16.msra.mxu0 %v685
    %938 = vmatprep.subr.bf16.mxu0 %v678
    %939 = vmatpush1.bf16.msra.mxu0 %v677
    %940 = vmatprep.subr.bf16.mxu0 %v670
    %941 = vmatpush1.bf16.msra.mxu0 %v669
    %942 = vmatprep.subr.bf16.mxu0 %v662
    %943 = vmatpush1.bf16.msra.mxu0 %v661
    %944 = vmatprep.subr.bf16.mxu0 %v654
    %945 = vmatpush1.bf16.msra.mxu0 %v653
    %946 = vmatprep.subr.bf16.mxu0 %v646
    %947 = vmatpush1.bf16.msra.mxu0 %v645
    %948 = vmatprep.subr.bf16.mxu0 %v638
    %949 = vmatpush1.bf16.msra.mxu0 %v637
    %950 = vmatprep.subr.bf16.mxu0 %v758
    %951 = vmatpush2.bf16.msra.mxu0 %v757
    %952 = vmatprep.subr.bf16.mxu0 %v750
    %953 = vmatpush2.bf16.msra.mxu0 %v749
    %954 = vmatprep.subr.bf16.mxu0 %v742
    %955 = vmatpush2.bf16.msra.mxu0 %v741
    %956 = vmatprep.subr.bf16.mxu0 %v734
    %957 = vmatpush2.bf16.msra.mxu0 %v733
    %958 = vmatprep.subr.bf16.mxu0 %v726
    %959 = vmatpush2.bf16.msra.mxu0 %v725
    %960 = vmatprep.subr.bf16.mxu0 %v718
    %961 = vmatpush2.bf16.msra.mxu0 %v717
    %962 = vmatprep.subr.bf16.mxu0 %v710
    %963 = vmatpush2.bf16.msra.mxu0 %v709
    %964 = vmatprep.subr.bf16.mxu0 %v702
    %965 = vmatpush2.bf16.msra.mxu0 %v701
    %966 = vmatprep.mubr.bf16.mxu0 %v80
    %967 = vmatmul.mubr.bf16.gmra.mxu0 %v79
    %v968 = vpop.f32.mrf.mxu0
    %v969 = vadd.f32 %v222, %v968
    %v970 = vpop.f32.mrf.mxu0
    %v971 = vadd.f32 %v226, %v970
    %v972 = vpop.f32.mrf.mxu0
    %v973 = vadd.f32 %v222, %v972
    %v974 = vpop.f32.mrf.mxu0
    %v975 = vadd.f32 %v226, %v974
    %976 = vdwg.mxu0
    %977 = vmatprep.subr.bf16.mxu0 %v696
    %978 = vmatpush1.bf16.msra.mxu0 %v695
    %979 = vmatprep.subr.bf16.mxu0 %v688
    %980 = vmatpush1.bf16.msra.mxu0 %v687
    %981 = vmatprep.subr.bf16.mxu0 %v680
    %982 = vmatpush1.bf16.msra.mxu0 %v679
    %983 = vmatprep.subr.bf16.mxu0 %v672
    %984 = vmatpush1.bf16.msra.mxu0 %v671
    %985 = vmatprep.subr.bf16.mxu0 %v664
    %986 = vmatpush1.bf16.msra.mxu0 %v663
    %987 = vmatprep.subr.bf16.mxu0 %v656
    %988 = vmatpush1.bf16.msra.mxu0 %v655
    %989 = vmatprep.subr.bf16.mxu0 %v648
    %990 = vmatpush1.bf16.msra.mxu0 %v647
    %991 = vmatprep.subr.bf16.mxu0 %v640
    %992 = vmatpush1.bf16.msra.mxu0 %v639
    %993 = vmatprep.subr.bf16.mxu0 %v760
    %994 = vmatpush2.bf16.msra.mxu0 %v759
    %995 = vmatprep.subr.bf16.mxu0 %v752
    %996 = vmatpush2.bf16.msra.mxu0 %v751
    %997 = vmatprep.subr.bf16.mxu0 %v744
    %998 = vmatpush2.bf16.msra.mxu0 %v743
    %999 = vmatprep.subr.bf16.mxu0 %v736
    %1000 = vmatpush2.bf16.msra.mxu0 %v735
    %1001 = vmatprep.subr.bf16.mxu0 %v728
    %1002 = vmatpush2.bf16.msra.mxu0 %v727
    %1003 = vmatprep.subr.bf16.mxu0 %v720
    %1004 = vmatpush2.bf16.msra.mxu0 %v719
    %1005 = vmatprep.subr.bf16.mxu0 %v712
    %1006 = vmatpush2.bf16.msra.mxu0 %v711
    %1007 = vmatprep.subr.bf16.mxu0 %v704
    %1008 = vmatpush2.bf16.msra.mxu0 %v703
    %1009 = vmatprep.mubr.bf16.mxu0 %v80
    %1010 = vmatmul.mubr.bf16.gmra.mxu0 %v79
    %v1011 = vpop.f32.mrf.mxu0
    %v1012 = vadd.f32 %v230, %v1011
    %v1013 = vpop.f32.mrf.mxu0
    %v1014 = vadd.f32 %v234, %v1013
    %v1015 = vpop.f32.mrf.mxu0
    %v1016 = vadd.f32 %v230, %v1015
    %v1017 = vpop.f32.mrf.mxu0
    %v1018 = vadd.f32 %v234, %v1017
    %1019 = vdwg.mxu0
    %1020 = vmatprep.subr.bf16.mxu0 %v698
    %1021 = vmatpush1.bf16.msra.mxu0 %v697
    %1022 = vmatprep.subr.bf16.mxu0 %v690
    %1023 = vmatpush1.bf16.msra.mxu0 %v689
    %1024 = vmatprep.subr.bf16.mxu0 %v682
    %1025 = vmatpush1.bf16.msra.mxu0 %v681
    %1026 = vmatprep.subr.bf16.mxu0 %v674
    %1027 = vmatpush1.bf16.msra.mxu0 %v673
    %1028 = vmatprep.subr.bf16.mxu0 %v666
    %1029 = vmatpush1.bf16.msra.mxu0 %v665
    %1030 = vmatprep.subr.bf16.mxu0 %v658
    %1031 = vmatpush1.bf16.msra.mxu0 %v657
    %1032 = vmatprep.subr.bf16.mxu0 %v650
    %1033 = vmatpush1.bf16.msra.mxu0 %v649
    %1034 = vmatprep.subr.bf16.mxu0 %v642
    %1035 = vmatpush1.bf16.msra.mxu0 %v641
    %1036 = vmatprep.subr.bf16.mxu0 %v762
    %1037 = vmatpush2.bf16.msra.mxu0 %v761
    %1038 = vmatprep.subr.bf16.mxu0 %v754
    %1039 = vmatpush2.bf16.msra.mxu0 %v753
    %1040 = vmatprep.subr.bf16.mxu0 %v746
    %1041 = vmatpush2.bf16.msra.mxu0 %v745
    %1042 = vmatprep.subr.bf16.mxu0 %v738
    %1043 = vmatpush2.bf16.msra.mxu0 %v737
    %1044 = vmatprep.subr.bf16.mxu0 %v730
    %1045 = vmatpush2.bf16.msra.mxu0 %v729
    %1046 = vmatprep.subr.bf16.mxu0 %v722
    %1047 = vmatpush2.bf16.msra.mxu0 %v721
    %1048 = vmatprep.subr.bf16.mxu0 %v714
    %1049 = vmatpush2.bf16.msra.mxu0 %v713
    %1050 = vmatprep.subr.bf16.mxu0 %v706
    %1051 = vmatpush2.bf16.msra.mxu0 %v705
    %1052 = vmatprep.mubr.bf16.mxu0 %v80
    %1053 = vmatmul.mubr.bf16.gmra.mxu0 %v79
    %v1054 = vpop.f32.mrf.mxu0
    %v1055 = vadd.f32 %v238, %v1054
    %v1056 = vpop.f32.mrf.mxu0
    %v1057 = vadd.f32 %v242, %v1056
    %v1058 = vpop.f32.mrf.mxu0
    %v1059 = vadd.f32 %v238, %v1058
    %v1060 = vpop.f32.mrf.mxu0
    %v1061 = vadd.f32 %v242, %v1060
    %1062 = vdwg.mxu0
    %v1063 = vmax.f32 %v926, 0.0
    %v1064 = vmax.f32 %v928, 0.0
    %v1065 = vmax.f32 %v969, 0.0
    %v1066 = vmax.f32 %v971, 0.0
    %v1067 = vmax.f32 %v1012, 0.0
    %v1068 = vmax.f32 %v1014, 0.0
    %v1069 = vmax.f32 %v1055, 0.0
    %v1070 = vmax.f32 %v1057, 0.0
    %v1071 = vmax.f32 %v930, 0.0
    %v1072 = vmax.f32 %v932, 0.0
    %v1073 = vmax.f32 %v973, 0.0
    %v1074 = vmax.f32 %v975, 0.0
    %v1075 = vmax.f32 %v1016, 0.0
    %v1076 = vmax.f32 %v1018, 0.0
    %v1077 = vmax.f32 %v1059, 0.0
    %v1078 = vmax.f32 %v1061, 0.0
    %v1079 = vpack.c.bf16 %v1071, %v1063
    %v1080 = vpack.c.bf16 %v1072, %v1064
    %v1081 = vpack.c.bf16 %v1073, %v1065
    %v1082 = vpack.c.bf16 %v1074, %v1066
    %v1083 = vpack.c.bf16 %v1075, %v1067
    %v1084 = vpack.c.bf16 %v1076, %v1068
    %v1085 = vpack.c.bf16 %v1077, %v1069
    %v1086 = vpack.c.bf16 %v1078, %v1070
    %v1087 = vld [vmem:[#allocation8] sm:$0xf]
    %v1088 = vld [vmem:[#allocation8 + $0x4] sm:$0xf]
    %v1089 = vld [vmem:[#allocation8 + $0x8] sm:$0xf]
    %v1090 = vld [vmem:[#allocation8 + $0xc] sm:$0xf]
    %v1091 = vld [vmem:[#allocation8 + $0x10] sm:$0xf]
    %v1092 = vld [vmem:[#allocation8 + $0x14] sm:$0xf]
    %v1093 = vld [vmem:[#allocation8 + $0x18] sm:$0xf]
    %v1094 = vld [vmem:[#allocation8 + $0x1c] sm:$0xf]
    %v1095 = vld [vmem:[#allocation8 + $0x20] sm:$0xf]
    %v1096 = vld [vmem:[#allocation8 + $0x24] sm:$0xf]
    %v1097 = vld [vmem:[#allocation8 + $0x28] sm:$0xf]
    %v1098 = vld [vmem:[#allocation8 + $0x2c] sm:$0xf]
    %v1099 = vld [vmem:[#allocation8 + $0x30] sm:$0xf]
    %v1100 = vld [vmem:[#allocation8 + $0x34] sm:$0xf]
    %v1101 = vld [vmem:[#allocation8 + $0x38] sm:$0xf]
    %v1102 = vld [vmem:[#allocation8 + $0x3c] sm:$0xf]
    %v1103 = vld [vmem:[#allocation8 + $0x40] sm:$0xf]
    %v1104 = vld [vmem:[#allocation8 + $0x44] sm:$0xf]
    %v1105 = vld [vmem:[#allocation8 + $0x48] sm:$0xf]
    %v1106 = vld [vmem:[#allocation8 + $0x4c] sm:$0xf]
    %v1107 = vld [vmem:[#allocation8 + $0x50] sm:$0xf]
    %v1108 = vld [vmem:[#allocation8 + $0x54] sm:$0xf]
    %v1109 = vld [vmem:[#allocation8 + $0x58] sm:$0xf]
    %v1110 = vld [vmem:[#allocation8 + $0x5c] sm:$0xf]
    %v1111 = vld [vmem:[#allocation8 + $0x60] sm:$0xf]
    %v1112 = vld [vmem:[#allocation8 + $0x64] sm:$0xf]
    %v1113 = vld [vmem:[#allocation8 + $0x68] sm:$0xf]
    %v1114 = vld [vmem:[#allocation8 + $0x6c] sm:$0xf]
    %v1115 = vld [vmem:[#allocation8 + $0x70] sm:$0xf]
    %v1116 = vld [vmem:[#allocation8 + $0x74] sm:$0xf]
    %v1117 = vld [vmem:[#allocation8 + $0x78] sm:$0xf]
    %v1118 = vld [vmem:[#allocation8 + $0x7c] sm:$0xf]
    %v1119 = vld [vmem:[#allocation8 + $0x80] sm:$0xf]
    %v1120 = vld [vmem:[#allocation8 + $0x84] sm:$0xf]
    %v1121 = vld [vmem:[#allocation8 + $0x88] sm:$0xf]
    %v1122 = vld [vmem:[#allocation8 + $0x8c] sm:$0xf]
    %v1123 = vld [vmem:[#allocation8 + $0x90] sm:$0xf]
    %v1124 = vld [vmem:[#allocation8 + $0x94] sm:$0xf]
    %v1125 = vld [vmem:[#allocation8 + $0x98] sm:$0xf]
    %v1126 = vld [vmem:[#allocation8 + $0x9c] sm:$0xf]
    %v1127 = vld [vmem:[#allocation8 + $0xa0] sm:$0xf]
    %v1128 = vld [vmem:[#allocation8 + $0xa4] sm:$0xf]
    %v1129 = vld [vmem:[#allocation8 + $0xa8] sm:$0xf]
    %v1130 = vld [vmem:[#allocation8 + $0xac] sm:$0xf]
    %v1131 = vld [vmem:[#allocation8 + $0xb0] sm:$0xf]
    %v1132 = vld [vmem:[#allocation8 + $0xb4] sm:$0xf]
    %v1133 = vld [vmem:[#allocation8 + $0xb8] sm:$0xf]
    %v1134 = vld [vmem:[#allocation8 + $0xbc] sm:$0xf]
    %v1135 = vld [vmem:[#allocation8 + $0xc0] sm:$0xf]
    %v1136 = vld [vmem:[#allocation8 + $0xc4] sm:$0xf]
    %v1137 = vld [vmem:[#allocation8 + $0xc8] sm:$0xf]
    %v1138 = vld [vmem:[#allocation8 + $0xcc] sm:$0xf]
    %v1139 = vld [vmem:[#allocation8 + $0xd0] sm:$0xf]
    %v1140 = vld [vmem:[#allocation8 + $0xd4] sm:$0xf]
    %v1141 = vld [vmem:[#allocation8 + $0xd8] sm:$0xf]
    %v1142 = vld [vmem:[#allocation8 + $0xdc] sm:$0xf]
    %v1143 = vld [vmem:[#allocation8 + $0xe0] sm:$0xf]
    %v1144 = vld [vmem:[#allocation8 + $0xe4] sm:$0xf]
    %v1145 = vld [vmem:[#allocation8 + $0xe8] sm:$0xf]
    %v1146 = vld [vmem:[#allocation8 + $0xec] sm:$0xf]
    %v1147 = vld [vmem:[#allocation8 + $0xf0] sm:$0xf]
    %v1148 = vld [vmem:[#allocation8 + $0xf4] sm:$0xf]
    %v1149 = vld [vmem:[#allocation8 + $0xf8] sm:$0xf]
    %v1150 = vld [vmem:[#allocation8 + $0xfc] sm:$0xf]
    %v1151 = vld [vmem:[#allocation8 + $0x100] sm:$0xf]
    %v1152 = vld [vmem:[#allocation8 + $0x104] sm:$0xf]
    %v1153 = vld [vmem:[#allocation8 + $0x108] sm:$0xf]
    %v1154 = vld [vmem:[#allocation8 + $0x10c] sm:$0xf]
    %v1155 = vld [vmem:[#allocation8 + $0x110] sm:$0xf]
    %v1156 = vld [vmem:[#allocation8 + $0x114] sm:$0xf]
    %v1157 = vld [vmem:[#allocation8 + $0x118] sm:$0xf]
    %v1158 = vld [vmem:[#allocation8 + $0x11c] sm:$0xf]
    %v1159 = vld [vmem:[#allocation8 + $0x120] sm:$0xf]
    %v1160 = vld [vmem:[#allocation8 + $0x124] sm:$0xf]
    %v1161 = vld [vmem:[#allocation8 + $0x128] sm:$0xf]
    %v1162 = vld [vmem:[#allocation8 + $0x12c] sm:$0xf]
    %v1163 = vld [vmem:[#allocation8 + $0x130] sm:$0xf]
    %v1164 = vld [vmem:[#allocation8 + $0x134] sm:$0xf]
    %v1165 = vld [vmem:[#allocation8 + $0x138] sm:$0xf]
    %v1166 = vld [vmem:[#allocation8 + $0x13c] sm:$0xf]
    %v1167 = vld [vmem:[#allocation8 + $0x140] sm:$0xf]
    %v1168 = vld [vmem:[#allocation8 + $0x144] sm:$0xf]
    %v1169 = vld [vmem:[#allocation8 + $0x148] sm:$0xf]
    %v1170 = vld [vmem:[#allocation8 + $0x14c] sm:$0xf]
    %v1171 = vld [vmem:[#allocation8 + $0x150] sm:$0xf]
    %v1172 = vld [vmem:[#allocation8 + $0x154] sm:$0xf]
    %v1173 = vld [vmem:[#allocation8 + $0x158] sm:$0xf]
    %v1174 = vld [vmem:[#allocation8 + $0x15c] sm:$0xf]
    %v1175 = vld [vmem:[#allocation8 + $0x160] sm:$0xf]
    %v1176 = vld [vmem:[#allocation8 + $0x164] sm:$0xf]
    %v1177 = vld [vmem:[#allocation8 + $0x168] sm:$0xf]
    %v1178 = vld [vmem:[#allocation8 + $0x16c] sm:$0xf]
    %v1179 = vld [vmem:[#allocation8 + $0x170] sm:$0xf]
    %v1180 = vld [vmem:[#allocation8 + $0x174] sm:$0xf]
    %v1181 = vld [vmem:[#allocation8 + $0x178] sm:$0xf]
    %v1182 = vld [vmem:[#allocation8 + $0x17c] sm:$0xf]
    %v1183 = vld [vmem:[#allocation8 + $0x180] sm:$0xf]
    %v1184 = vld [vmem:[#allocation8 + $0x184] sm:$0xf]
    %v1185 = vld [vmem:[#allocation8 + $0x188] sm:$0xf]
    %v1186 = vld [vmem:[#allocation8 + $0x18c] sm:$0xf]
    %v1187 = vld [vmem:[#allocation8 + $0x190] sm:$0xf]
    %v1188 = vld [vmem:[#allocation8 + $0x194] sm:$0xf]
    %v1189 = vld [vmem:[#allocation8 + $0x198] sm:$0xf]
    %v1190 = vld [vmem:[#allocation8 + $0x19c] sm:$0xf]
    %v1191 = vld [vmem:[#allocation8 + $0x1a0] sm:$0xf]
    %v1192 = vld [vmem:[#allocation8 + $0x1a4] sm:$0xf]
    %v1193 = vld [vmem:[#allocation8 + $0x1a8] sm:$0xf]
    %v1194 = vld [vmem:[#allocation8 + $0x1ac] sm:$0xf]
    %v1195 = vld [vmem:[#allocation8 + $0x1b0] sm:$0xf]
    %v1196 = vld [vmem:[#allocation8 + $0x1b4] sm:$0xf]
    %v1197 = vld [vmem:[#allocation8 + $0x1b8] sm:$0xf]
    %v1198 = vld [vmem:[#allocation8 + $0x1bc] sm:$0xf]
    %v1199 = vld [vmem:[#allocation8 + $0x1c0] sm:$0xf]
    %v1200 = vld [vmem:[#allocation8 + $0x1c4] sm:$0xf]
    %v1201 = vld [vmem:[#allocation8 + $0x1c8] sm:$0xf]
    %v1202 = vld [vmem:[#allocation8 + $0x1cc] sm:$0xf]
    %v1203 = vld [vmem:[#allocation8 + $0x1d0] sm:$0xf]
    %v1204 = vld [vmem:[#allocation8 + $0x1d4] sm:$0xf]
    %v1205 = vld [vmem:[#allocation8 + $0x1d8] sm:$0xf]
    %v1206 = vld [vmem:[#allocation8 + $0x1dc] sm:$0xf]
    %v1207 = vld [vmem:[#allocation8 + $0x1e0] sm:$0xf]
    %v1208 = vld [vmem:[#allocation8 + $0x1e4] sm:$0xf]
    %v1209 = vld [vmem:[#allocation8 + $0x1e8] sm:$0xf]
    %v1210 = vld [vmem:[#allocation8 + $0x1ec] sm:$0xf]
    %v1211 = vld [vmem:[#allocation8 + $0x1f0] sm:$0xf]
    %v1212 = vld [vmem:[#allocation8 + $0x1f4] sm:$0xf]
    %v1213 = vld [vmem:[#allocation8 + $0x1f8] sm:$0xf]
    %v1214 = vld [vmem:[#allocation8 + $0x1fc] sm:$0xf]
    %v1215 = vld [vmem:[%s4] sm:$0x1]
    %v1217 = vlaneseq
    %v1218 = vshrl.u32 %v1217, 7
    %v1219 = vsub.s32 0, %v1218
    %v1220 = vrot.slane %v1215, %v1219
    %v1350 = vunpack.c.l.b16 %v1087
    %v1351 = vunpack.c.l.b16 %v1088
    %v1352 = vunpack.c.l.b16 %v1089
    %v1353 = vunpack.c.l.b16 %v1090
    %v1354 = vunpack.c.l.b16 %v1091
    %v1355 = vunpack.c.l.b16 %v1092
    %v1356 = vunpack.c.l.b16 %v1093
    %v1357 = vunpack.c.l.b16 %v1094
    %v1358 = vunpack.c.l.b16 %v1095
    %v1359 = vunpack.c.l.b16 %v1096
    %v1360 = vunpack.c.l.b16 %v1097
    %v1361 = vunpack.c.l.b16 %v1098
    %v1362 = vunpack.c.l.b16 %v1099
    %v1363 = vunpack.c.l.b16 %v1100
    %v1364 = vunpack.c.l.b16 %v1101
    %v1365 = vunpack.c.l.b16 %v1102
    %v1366 = vunpack.c.l.b16 %v1103
    %v1367 = vunpack.c.l.b16 %v1104
    %v1368 = vunpack.c.l.b16 %v1105
    %v1369 = vunpack.c.l.b16 %v1106
    %v1370 = vunpack.c.l.b16 %v1107
    %v1371 = vunpack.c.l.b16 %v1108
    %v1372 = vunpack.c.l.b16 %v1109
    %v1373 = vunpack.c.l.b16 %v1110
    %v1374 = vunpack.c.l.b16 %v1111
    %v1375 = vunpack.c.l.b16 %v1112
    %v1376 = vunpack.c.l.b16 %v1113
    %v1377 = vunpack.c.l.b16 %v1114
    %v1378 = vunpack.c.l.b16 %v1115
    %v1379 = vunpack.c.l.b16 %v1116
    %v1380 = vunpack.c.l.b16 %v1117
    %v1381 = vunpack.c.l.b16 %v1118
    %v1382 = vunpack.c.l.b16 %v1119
    %v1383 = vunpack.c.l.b16 %v1120
    %v1384 = vunpack.c.l.b16 %v1121
    %v1385 = vunpack.c.l.b16 %v1122
    %v1386 = vunpack.c.l.b16 %v1123
    %v1387 = vunpack.c.l.b16 %v1124
    %v1388 = vunpack.c.l.b16 %v1125
    %v1389 = vunpack.c.l.b16 %v1126
    %v1390 = vunpack.c.l.b16 %v1127
    %v1391 = vunpack.c.l.b16 %v1128
    %v1392 = vunpack.c.l.b16 %v1129
    %v1393 = vunpack.c.l.b16 %v1130
    %v1394 = vunpack.c.l.b16 %v1131
    %v1395 = vunpack.c.l.b16 %v1132
    %v1396 = vunpack.c.l.b16 %v1133
    %v1397 = vunpack.c.l.b16 %v1134
    %v1398 = vunpack.c.l.b16 %v1135
    %v1399 = vunpack.c.l.b16 %v1136
    %v1400 = vunpack.c.l.b16 %v1137
    %v1401 = vunpack.c.l.b16 %v1138
    %v1402 = vunpack.c.l.b16 %v1139
    %v1403 = vunpack.c.l.b16 %v1140
    %v1404 = vunpack.c.l.b16 %v1141
    %v1405 = vunpack.c.l.b16 %v1142
    %v1406 = vunpack.c.l.b16 %v1143
    %v1407 = vunpack.c.l.b16 %v1144
    %v1408 = vunpack.c.l.b16 %v1145
    %v1409 = vunpack.c.l.b16 %v1146
    %v1410 = vunpack.c.l.b16 %v1147
    %v1411 = vunpack.c.l.b16 %v1148
    %v1412 = vunpack.c.l.b16 %v1149
    %v1413 = vunpack.c.l.b16 %v1150
    %v1414 = vunpack.c.l.b16 %v1151
    %v1415 = vunpack.c.l.b16 %v1152
    %v1416 = vunpack.c.l.b16 %v1153
    %v1417 = vunpack.c.l.b16 %v1154
    %v1418 = vunpack.c.l.b16 %v1155
    %v1419 = vunpack.c.l.b16 %v1156
    %v1420 = vunpack.c.l.b16 %v1157
    %v1421 = vunpack.c.l.b16 %v1158
    %v1422 = vunpack.c.l.b16 %v1159
    %v1423 = vunpack.c.l.b16 %v1160
    %v1424 = vunpack.c.l.b16 %v1161
    %v1425 = vunpack.c.l.b16 %v1162
    %v1426 = vunpack.c.l.b16 %v1163
    %v1427 = vunpack.c.l.b16 %v1164
    %v1428 = vunpack.c.l.b16 %v1165
    %v1429 = vunpack.c.l.b16 %v1166
    %v1430 = vunpack.c.l.b16 %v1167
    %v1431 = vunpack.c.l.b16 %v1168
    %v1432 = vunpack.c.l.b16 %v1169
    %v1433 = vunpack.c.l.b16 %v1170
    %v1434 = vunpack.c.l.b16 %v1171
    %v1435 = vunpack.c.l.b16 %v1172
    %v1436 = vunpack.c.l.b16 %v1173
    %v1437 = vunpack.c.l.b16 %v1174
    %v1438 = vunpack.c.l.b16 %v1175
    %v1439 = vunpack.c.l.b16 %v1176
    %v1440 = vunpack.c.l.b16 %v1177
    %v1441 = vunpack.c.l.b16 %v1178
    %v1442 = vunpack.c.l.b16 %v1179
    %v1443 = vunpack.c.l.b16 %v1180
    %v1444 = vunpack.c.l.b16 %v1181
    %v1445 = vunpack.c.l.b16 %v1182
    %v1446 = vunpack.c.l.b16 %v1183
    %v1447 = vunpack.c.l.b16 %v1184
    %v1448 = vunpack.c.l.b16 %v1185
    %v1449 = vunpack.c.l.b16 %v1186
    %v1450 = vunpack.c.l.b16 %v1187
    %v1451 = vunpack.c.l.b16 %v1188
    %v1452 = vunpack.c.l.b16 %v1189
    %v1453 = vunpack.c.l.b16 %v1190
    %v1454 = vunpack.c.l.b16 %v1191
    %v1455 = vunpack.c.l.b16 %v1192
    %v1456 = vunpack.c.l.b16 %v1193
    %v1457 = vunpack.c.l.b16 %v1194
    %v1458 = vunpack.c.l.b16 %v1195
    %v1459 = vunpack.c.l.b16 %v1196
    %v1460 = vunpack.c.l.b16 %v1197
    %v1461 = vunpack.c.l.b16 %v1198
    %v1462 = vunpack.c.l.b16 %v1199
    %v1463 = vunpack.c.l.b16 %v1200
    %v1464 = vunpack.c.l.b16 %v1201
    %v1465 = vunpack.c.l.b16 %v1202
    %v1466 = vunpack.c.l.b16 %v1203
    %v1467 = vunpack.c.l.b16 %v1204
    %v1468 = vunpack.c.l.b16 %v1205
    %v1469 = vunpack.c.l.b16 %v1206
    %v1470 = vunpack.c.l.b16 %v1207
    %v1471 = vunpack.c.l.b16 %v1208
    %v1472 = vunpack.c.l.b16 %v1209
    %v1473 = vunpack.c.l.b16 %v1210
    %v1474 = vunpack.c.l.b16 %v1211
    %v1475 = vunpack.c.l.b16 %v1212
    %v1476 = vunpack.c.l.b16 %v1213
    %v1477 = vunpack.c.l.b16 %v1214
    %v1478 = vpack.c.b16 %v1351, %v1350
    %v1479 = vpack.c.b16 %v1353, %v1352
    %v1480 = vpack.c.b16 %v1355, %v1354
    %v1481 = vpack.c.b16 %v1357, %v1356
    %v1482 = vpack.c.b16 %v1359, %v1358
    %v1483 = vpack.c.b16 %v1361, %v1360
    %v1484 = vpack.c.b16 %v1363, %v1362
    %v1485 = vpack.c.b16 %v1365, %v1364
    %v1486 = vpack.c.b16 %v1367, %v1366
    %v1487 = vpack.c.b16 %v1369, %v1368
    %v1488 = vpack.c.b16 %v1371, %v1370
    %v1489 = vpack.c.b16 %v1373, %v1372
    %v1490 = vpack.c.b16 %v1375, %v1374
    %v1491 = vpack.c.b16 %v1377, %v1376
    %v1492 = vpack.c.b16 %v1379, %v1378
    %v1493 = vpack.c.b16 %v1381, %v1380
    %v1494 = vpack.c.b16 %v1383, %v1382
    %v1495 = vpack.c.b16 %v1385, %v1384
    %v1496 = vpack.c.b16 %v1387, %v1386
    %v1497 = vpack.c.b16 %v1389, %v1388
    %v1498 = vpack.c.b16 %v1391, %v1390
    %v1499 = vpack.c.b16 %v1393, %v1392
    %v1500 = vpack.c.b16 %v1395, %v1394
    %v1501 = vpack.c.b16 %v1397, %v1396
    %v1502 = vpack.c.b16 %v1399, %v1398
    %v1503 = vpack.c.b16 %v1401, %v1400
    %v1504 = vpack.c.b16 %v1403, %v1402
    %v1505 = vpack.c.b16 %v1405, %v1404
    %v1506 = vpack.c.b16 %v1407, %v1406
    %v1507 = vpack.c.b16 %v1409, %v1408
    %v1508 = vpack.c.b16 %v1411, %v1410
    %v1509 = vpack.c.b16 %v1413, %v1412
    %v1510 = vpack.c.b16 %v1415, %v1414
    %v1511 = vpack.c.b16 %v1417, %v1416
    %v1512 = vpack.c.b16 %v1419, %v1418
    %v1513 = vpack.c.b16 %v1421, %v1420
    %v1514 = vpack.c.b16 %v1423, %v1422
    %v1515 = vpack.c.b16 %v1425, %v1424
    %v1516 = vpack.c.b16 %v1427, %v1426
    %v1517 = vpack.c.b16 %v1429, %v1428
    %v1518 = vpack.c.b16 %v1431, %v1430
    %v1519 = vpack.c.b16 %v1433, %v1432
    %v1520 = vpack.c.b16 %v1435, %v1434
    %v1521 = vpack.c.b16 %v1437, %v1436
    %v1522 = vpack.c.b16 %v1439, %v1438
    %v1523 = vpack.c.b16 %v1441, %v1440
    %v1524 = vpack.c.b16 %v1443, %v1442
    %v1525 = vpack.c.b16 %v1445, %v1444
    %v1526 = vpack.c.b16 %v1447, %v1446
    %v1527 = vpack.c.b16 %v1449, %v1448
    %v1528 = vpack.c.b16 %v1451, %v1450
    %v1529 = vpack.c.b16 %v1453, %v1452
    %v1530 = vpack.c.b16 %v1455, %v1454
    %v1531 = vpack.c.b16 %v1457, %v1456
    %v1532 = vpack.c.b16 %v1459, %v1458
    %v1533 = vpack.c.b16 %v1461, %v1460
    %v1534 = vpack.c.b16 %v1463, %v1462
    %v1535 = vpack.c.b16 %v1465, %v1464
    %v1536 = vpack.c.b16 %v1467, %v1466
    %v1537 = vpack.c.b16 %v1469, %v1468
    %v1538 = vpack.c.b16 %v1471, %v1470
    %v1539 = vpack.c.b16 %v1473, %v1472
    %v1540 = vpack.c.b16 %v1475, %v1474
    %v1541 = vpack.c.b16 %v1477, %v1476
    %1606 = vmatprep.subr.bf16.mxu0 0
    %1607 = vmatpush1.bf16.msra.mxu0 %v1485
    %1608 = vmatprep.subr.bf16.mxu0 0
    %1609 = vmatpush1.bf16.msra.mxu0 %v1484
    %1610 = vmatprep.subr.bf16.mxu0 0
    %1611 = vmatpush1.bf16.msra.mxu0 %v1483
    %1612 = vmatprep.subr.bf16.mxu0 0
    %1613 = vmatpush1.bf16.msra.mxu0 %v1482
    %1614 = vmatprep.subr.bf16.mxu0 0
    %1615 = vmatpush1.bf16.msra.mxu0 %v1481
    %1616 = vmatprep.subr.bf16.mxu0 0
    %1617 = vmatpush1.bf16.msra.mxu0 %v1480
    %1618 = vmatprep.subr.bf16.mxu0 0
    %1619 = vmatpush1.bf16.msra.mxu0 %v1479
    %1620 = vmatprep.subr.bf16.mxu0 0
    %1621 = vmatpush1.bf16.msra.mxu0 %v1478
    %1622 = vmatprep.subr.bf16.mxu0 0
    %1623 = vmatpush2.bf16.msra.mxu0 %v1493
    %1624 = vmatprep.subr.bf16.mxu0 0
    %1625 = vmatpush2.bf16.msra.mxu0 %v1492
    %1626 = vmatprep.subr.bf16.mxu0 0
    %1627 = vmatpush2.bf16.msra.mxu0 %v1491
    %1628 = vmatprep.subr.bf16.mxu0 0
    %1629 = vmatpush2.bf16.msra.mxu0 %v1490
    %1630 = vmatprep.subr.bf16.mxu0 0
    %1631 = vmatpush2.bf16.msra.mxu0 %v1489
    %1632 = vmatprep.subr.bf16.mxu0 0
    %1633 = vmatpush2.bf16.msra.mxu0 %v1488
    %1634 = vmatprep.subr.bf16.mxu0 0
    %1635 = vmatpush2.bf16.msra.mxu0 %v1487
    %1636 = vmatprep.subr.bf16.mxu0 0
    %1637 = vmatpush2.bf16.msra.mxu0 %v1486
    %1638 = vmatprep.mubr.bf16.mxu0 %v1080
    %1639 = vmatmul.mubr.bf16.gmra.mxu0 %v1079
    %v1640 = vpop.f32.mrf.mxu0
    %v1641 = vadd.f32 %v1220, %v1640
    %v1642 = vpop.f32.mrf.mxu0
    %v1643 = vpop.f32.mrf.mxu0
    %v1644 = vadd.f32 %v1220, %v1643
    %v1645 = vpop.f32.mrf.mxu0
    %1646 = vdwg.mxu0
    %1647 = vmatprep.subr.bf16.mxu0 0
    %1648 = vmatpush1.bf16.msra.mxu0 %v1501
    %1649 = vmatprep.subr.bf16.mxu0 0
    %1650 = vmatpush1.bf16.msra.mxu0 %v1500
    %1651 = vmatprep.subr.bf16.mxu0 0
    %1652 = vmatpush1.bf16.msra.mxu0 %v1499
    %1653 = vmatprep.subr.bf16.mxu0 0
    %1654 = vmatpush1.bf16.msra.mxu0 %v1498
    %1655 = vmatprep.subr.bf16.mxu0 0
    %1656 = vmatpush1.bf16.msra.mxu0 %v1497
    %1657 = vmatprep.subr.bf16.mxu0 0
    %1658 = vmatpush1.bf16.msra.mxu0 %v1496
    %1659 = vmatprep.subr.bf16.mxu0 0
    %1660 = vmatpush1.bf16.msra.mxu0 %v1495
    %1661 = vmatprep.subr.bf16.mxu0 0
    %1662 = vmatpush1.bf16.msra.mxu0 %v1494
    %1663 = vmatprep.subr.bf16.mxu0 0
    %1664 = vmatpush2.bf16.msra.mxu0 %v1509
    %1665 = vmatprep.subr.bf16.mxu0 0
    %1666 = vmatpush2.bf16.msra.mxu0 %v1508
    %1667 = vmatprep.subr.bf16.mxu0 0
    %1668 = vmatpush2.bf16.msra.mxu0 %v1507
    %1669 = vmatprep.subr.bf16.mxu0 0
    %1670 = vmatpush2.bf16.msra.mxu0 %v1506
    %1671 = vmatprep.subr.bf16.mxu0 0
    %1672 = vmatpush2.bf16.msra.mxu0 %v1505
    %1673 = vmatprep.subr.bf16.mxu0 0
    %1674 = vmatpush2.bf16.msra.mxu0 %v1504
    %1675 = vmatprep.subr.bf16.mxu0 0
    %1676 = vmatpush2.bf16.msra.mxu0 %v1503
    %1677 = vmatprep.subr.bf16.mxu0 0
    %1678 = vmatpush2.bf16.msra.mxu0 %v1502
    %1679 = vmatprep.mubr.bf16.mxu0 %v1082
    %1680 = vmatmul.mubr.bf16.gmra.mxu0 %v1081
    %v1681 = vpop.f32.mrf.mxu0
    %v1682 = vadd.f32 %v1641, %v1681
    %v1683 = vpop.f32.mrf.mxu0
    %v1684 = vpop.f32.mrf.mxu0
    %v1685 = vadd.f32 %v1644, %v1684
    %v1686 = vpop.f32.mrf.mxu0
    %1687 = vdwg.mxu0
    %1688 = vmatprep.subr.bf16.mxu0 0
    %1689 = vmatpush1.bf16.msra.mxu0 %v1517
    %1690 = vmatprep.subr.bf16.mxu0 0
    %1691 = vmatpush1.bf16.msra.mxu0 %v1516
    %1692 = vmatprep.subr.bf16.mxu0 0
    %1693 = vmatpush1.bf16.msra.mxu0 %v1515
    %1694 = vmatprep.subr.bf16.mxu0 0
    %1695 = vmatpush1.bf16.msra.mxu0 %v1514
    %1696 = vmatprep.subr.bf16.mxu0 0
    %1697 = vmatpush1.bf16.msra.mxu0 %v1513
    %1698 = vmatprep.subr.bf16.mxu0 0
    %1699 = vmatpush1.bf16.msra.mxu0 %v1512
    %1700 = vmatprep.subr.bf16.mxu0 0
    %1701 = vmatpush1.bf16.msra.mxu0 %v1511
    %1702 = vmatprep.subr.bf16.mxu0 0
    %1703 = vmatpush1.bf16.msra.mxu0 %v1510
    %1704 = vmatprep.subr.bf16.mxu0 0
    %1705 = vmatpush2.bf16.msra.mxu0 %v1525
    %1706 = vmatprep.subr.bf16.mxu0 0
    %1707 = vmatpush2.bf16.msra.mxu0 %v1524
    %1708 = vmatprep.subr.bf16.mxu0 0
    %1709 = vmatpush2.bf16.msra.mxu0 %v1523
    %1710 = vmatprep.subr.bf16.mxu0 0
    %1711 = vmatpush2.bf16.msra.mxu0 %v1522
    %1712 = vmatprep.subr.bf16.mxu0 0
    %1713 = vmatpush2.bf16.msra.mxu0 %v1521
    %1714 = vmatprep.subr.bf16.mxu0 0
    %1715 = vmatpush2.bf16.msra.mxu0 %v1520
    %1716 = vmatprep.subr.bf16.mxu0 0
    %1717 = vmatpush2.bf16.msra.mxu0 %v1519
    %1718 = vmatprep.subr.bf16.mxu0 0
    %1719 = vmatpush2.bf16.msra.mxu0 %v1518
    %1720 = vmatprep.mubr.bf16.mxu0 %v1084
    %1721 = vmatmul.mubr.bf16.gmra.mxu0 %v1083
    %v1722 = vpop.f32.mrf.mxu0
    %v1723 = vadd.f32 %v1682, %v1722
    %v1724 = vpop.f32.mrf.mxu0
    %v1725 = vpop.f32.mrf.mxu0
    %v1726 = vadd.f32 %v1685, %v1725
    %v1727 = vpop.f32.mrf.mxu0
    %1728 = vdwg.mxu0
    %1729 = vmatprep.subr.bf16.mxu0 0
    %1730 = vmatpush1.bf16.msra.mxu0 %v1533
    %1731 = vmatprep.subr.bf16.mxu0 0
    %1732 = vmatpush1.bf16.msra.mxu0 %v1532
    %1733 = vmatprep.subr.bf16.mxu0 0
    %1734 = vmatpush1.bf16.msra.mxu0 %v1531
    %1735 = vmatprep.subr.bf16.mxu0 0
    %1736 = vmatpush1.bf16.msra.mxu0 %v1530
    %1737 = vmatprep.subr.bf16.mxu0 0
    %1738 = vmatpush1.bf16.msra.mxu0 %v1529
    %1739 = vmatprep.subr.bf16.mxu0 0
    %1740 = vmatpush1.bf16.msra.mxu0 %v1528
    %1741 = vmatprep.subr.bf16.mxu0 0
    %1742 = vmatpush1.bf16.msra.mxu0 %v1527
    %1743 = vmatprep.subr.bf16.mxu0 0
    %1744 = vmatpush1.bf16.msra.mxu0 %v1526
    %1745 = vmatprep.subr.bf16.mxu0 0
    %1746 = vmatpush2.bf16.msra.mxu0 %v1541
    %1747 = vmatprep.subr.bf16.mxu0 0
    %1748 = vmatpush2.bf16.msra.mxu0 %v1540
    %1749 = vmatprep.subr.bf16.mxu0 0
    %1750 = vmatpush2.bf16.msra.mxu0 %v1539
    %1751 = vmatprep.subr.bf16.mxu0 0
    %1752 = vmatpush2.bf16.msra.mxu0 %v1538
    %1753 = vmatprep.subr.bf16.mxu0 0
    %1754 = vmatpush2.bf16.msra.mxu0 %v1537
    %1755 = vmatprep.subr.bf16.mxu0 0
    %1756 = vmatpush2.bf16.msra.mxu0 %v1536
    %1757 = vmatprep.subr.bf16.mxu0 0
    %1758 = vmatpush2.bf16.msra.mxu0 %v1535
    %1759 = vmatprep.subr.bf16.mxu0 0
    %1760 = vmatpush2.bf16.msra.mxu0 %v1534
    %1761 = vmatprep.mubr.bf16.mxu0 %v1086
    %1762 = vmatmul.mubr.bf16.gmra.mxu0 %v1085
    %v1763 = vpop.f32.mrf.mxu0
    %v1764 = vadd.f32 %v1723, %v1763
    %v1765 = vpop.f32.mrf.mxu0
    %v1766 = vpop.f32.mrf.mxu0
    %v1767 = vadd.f32 %v1726, %v1766
    %v1768 = vpop.f32.mrf.mxu0
    %1769 = vdwg.mxu0
    %vm1770 = vcmask 80896
    %1771 = vst.msk [vmem:[#allocation10] sm:$0xff] %vm1770, %v1764
    %1772 = vst.msk [vmem:[#allocation10 + $0x8] sm:$0xff] %vm1770, %v1767
    // Predicated region
    $region38: #{tpu_custom_call.1} parent=1 // pred_check
      _
    $region39: #{tpu_custom_call.1} parent=1 // pred_check_branch
      %1774 = sbr.rel (0) target = $region41
    $region40: #{tpu_custom_call.1} parent=1 // pred_region
      %s1776 = ssub.s32 256, 256
      %1777 = vsyncadd [#allocation4], %s1776
      %s1778 = sshll.u32 [#allocation10], 4
      %s1779 = int_to_ptr.vmem [resolvable:$true] %s1778
      %1784 = dma.vmem_to_hbm [thread:$0]  %s1779, 256, %s5, [#allocation4], 128, 128, 8
    $region41: #{tpu_custom_call.1} parent=1 // pred_fallthru
      _
    // Predicated region
    $region42: #{tpu_custom_call.1} parent=1 // pred_check
      _
    $region43: #{tpu_custom_call.1} parent=1 // pred_check_branch
      %1786 = sbr.rel (0) target = $region45
    $region44: #{tpu_custom_call.1} parent=1 // pred_region
      %1787 = dma.done [#allocation4], 256
    $region45: #{tpu_custom_call.1} parent=1 // pred_fallthru
      _
    %1788 = vsyncpa [#allocation3], 1
    %1789 = vsyncpa [#allocation6], 1
    %1790 = vsyncpa [#allocation9], 1
    %1791 = vsyncpa [#allocation4], 1

</llo_original>
